<compile_context>
chip_gen: v6e
topology: v6e:2x2x1
jax: 0.10.0
libtpu: 0.0.40
codegen_flags: <defaults>
</compile_context>

<pallas_src>
import functools

import jax
import jax.numpy as jnp
from jax.experimental import pallas as pl
from jax.experimental.pallas import tpu as pltpu


def _round_up(a, m):
    return ((a + m - 1) // m) * m


# ----------------------------------------------------------------------------
# Pallas kernel
# ----------------------------------------------------------------------------
def _make_kernel(num_stage: int):
    """Fused forward kernel; BN/bias already folded into weights/bias rows."""

    def kernel(*refs):
        # refs (inputs then outputs):
        #   0                     : x           (bm, Dpad)      bf16
        #   1                     : W1          (Dpad, H)       bf16
        #   2 .. 1+2*ns           : Wa_i, Wb_i  (H, H)          bf16 (per stage)
        #   2+2*ns                : Whead       (H, 2*Opad)     bf16 (mu | logvar)
        #   3+2*ns                : bias_rows   (8pad, H)       f32  (row per layer)
        #   4+2*ns                : bhead       (1, 2*Opad)     f32
        #   5+2*ns                : out         (bm, 2*Opad)    bf16
        x_ref = refs[0]
        w1_ref = refs[1]
        stage_w_refs = refs[2:2 + 2 * num_stage]
        whead_ref = refs[2 + 2 * num_stage]
        brows_ref = refs[3 + 2 * num_stage]
        bhead_ref = refs[4 + 2 * num_stage]
        out_ref = refs[5 + 2 * num_stage]

        b_all = brows_ref[...]            # (8pad, H) f32, single load
        bhead = bhead_ref[...]            # (1, 2*Opad) f32

        # layer 1: relu(BN1(w1(x)))  -- BN+bias folded into W1 / b_all[0]
        y = jnp.dot(x_ref[...], w1_ref[...], preferred_element_type=jnp.float32)
        y = jnp.maximum(y + b_all[0:1, :], 0.0)

        # residual stages
        row = 1
        for s in range(num_stage):
            wa_ref = stage_w_refs[2 * s]
            wb_ref = stage_w_refs[2 * s + 1]
            h = jnp.dot(y.astype(jnp.bfloat16), wa_ref[...],
                        preferred_element_type=jnp.float32)
            h = jnp.maximum(h + b_all[row:row + 1, :], 0.0)
            h = jnp.dot(h.astype(jnp.bfloat16), wb_ref[...],
                        preferred_element_type=jnp.float32)
            h = jnp.maximum(h + b_all[row + 1:row + 2, :], 0.0)
            row += 2
            y = y + h

        # fused heads: [mu | logvar] in one lane-dense matmul, bf16 store
        out = jnp.dot(y.astype(jnp.bfloat16), whead_ref[...],
                      preferred_element_type=jnp.float32)
        out_ref[...] = (out + bhead).astype(out_ref.dtype)

    return kernel


# ----------------------------------------------------------------------------
# Host-side (one-time) folding of BN + biases into weights, with padding
# ----------------------------------------------------------------------------
def fold_params(params):
    def fold(lin, bn):
        W = (lin["W"] * bn["scale"]).astype(jnp.float32)                # (in, out)
        c = (lin["b"] * bn["scale"] + bn["shift"]).astype(jnp.float32)  # (1, out)
        return W, c

    # layer 1: fold BN, then zero-pad D_in -> multiple of 128 (lane-dense x)
    W1, c1 = fold(params["w1"], params["bn1"])
    d_in = W1.shape[0]
    d_pad = _round_up(d_in, 128)
    if d_pad != d_in:
        W1 = jnp.pad(W1, ((0, d_pad - d_in), (0, 0)))
    W1 = W1.astype(jnp.bfloat16)

    stage_ws, bias_rows = [], [c1]
    for st in params["stages"]:
        Wa, ca = fold(st["w1"], st["bn1"])
        Wb, cb = fold(st["w2"], st["bn2"])
        stage_ws += [Wa.astype(jnp.bfloat16), Wb.astype(jnp.bfloat16)]
        bias_rows += [ca, cb]

    # heads: zero-pad each to a multiple of 128 columns, then fuse [mu|logvar]
    out_dim = params["fc_mu"]["W"].shape[1]
    head_pad = _round_up(out_dim, 128)

    def pad_head(W, b):
        Wp = jnp.pad(W, ((0, 0), (0, head_pad - out_dim)))
        bp = jnp.pad(b, ((0, 0), (0, head_pad - out_dim)))
        return Wp, bp

    Wmu, bmu = pad_head(params["fc_mu"]["W"], params["fc_mu"]["b"])
    Wlv, blv = pad_head(params["fc_logvar"]["W"], params["fc_logvar"]["b"])
    Whead = jnp.concatenate([Wmu, Wlv], axis=1).astype(jnp.bfloat16)   # (H, 2*Opad)
    bhead = jnp.concatenate([bmu, blv], axis=1).astype(jnp.float32)    # (1, 2*Opad)

    brows = jnp.concatenate(bias_rows, axis=0)                          # (1+2*ns, H)
    r = brows.shape[0]
    rpad = _round_up(r, 8)
    if rpad != r:
        brows = jnp.pad(brows, ((0, rpad - r), (0, 0)))

    return {"W1": W1, "stage_Ws": stage_ws, "Whead": Whead,
            "bias_rows": brows, "bhead": bhead}


# ----------------------------------------------------------------------------
# Wrapper
# ----------------------------------------------------------------------------
def linear_model_cvae_forward(x, folded, *, num_stage, out_dim, block_b=512):
    B, d_in = x.shape
    d_pad = folded["W1"].shape[0]          # static (shape)
    two_head = folded["Whead"].shape[1]    # static (shape)
    head_pad = two_head // 2

    # Adaptive batch tiling:
    #   small B  -> one tile, rows rounded up to a multiple of 8
    #   large B  -> even tiles rounded to a multiple of 16 (bf16 sublane pack)
    if B <= block_b:
        n_blk = 1
        bm = _round_up(max(B, 8), 8)
    else:
        n_blk = pl.cdiv(B, block_b)
        bm = _round_up(pl.cdiv(B, n_blk), 16)
    Bp = n_blk * bm

    # pad rows (batch) and columns (D_in -> 128), cast to bf16 host-side
    xp = jnp.pad(x, ((0, Bp - B), (0, d_pad - d_in))).astype(jnp.bfloat16)

    flat = [xp, folded["W1"], *folded["stage_Ws"], folded["Whead"],
            folded["bias_rows"], folded["bhead"]]

    def const_spec(shape):
        return pl.BlockSpec(shape, lambda i: (0, 0))

    in_specs = [pl.BlockSpec((bm, d_pad), lambda i: (i, 0))]
    in_specs += [const_spec(a.shape) for a in flat[1:]]
    out_specs = pl.BlockSpec((bm, two_head), lambda i: (i, 0))

    out = pl.pallas_call(
        _make_kernel(num_stage),
        out_shape=jax.ShapeDtypeStruct((Bp, two_head), jnp.bfloat16),
        grid=(n_blk,),
        in_specs=in_specs,
        out_specs=out_specs,
        compiler_params=pltpu.CompilerParams(
            dimension_semantics=("parallel",)),
    )(*flat)

    out = out.astype(jnp.float32)
    mu = out[:B, :out_dim]
    logvar = out[:B, head_pad:head_pad + out_dim]
    return mu, logvar


# ----------------------------------------------------------------------------
# Deterministic parameter construction (synthetic; matches module shapes)
# ----------------------------------------------------------------------------
def _linear_params(key, d_in, d_out):
    kw, kb = jax.random.split(key)
    W = jax.random.normal(kw, (d_in, d_out), jnp.float32) * 0.05  # (in, out)
    b = jax.random.normal(kb, (1, d_out), jnp.float32) * 0.05
    return {"W": W, "b": b}


def _bn_params(key, d, eps=1e-5):
    kg, kb, km, kv = jax.random.split(key, 4)
    gamma = 1.0 + 0.1 * jax.random.normal(kg, (1, d), jnp.float32)
    beta = 0.1 * jax.random.normal(kb, (1, d), jnp.float32)
    running_mean = 0.1 * jax.random.normal(km, (1, d), jnp.float32)
    running_var = 1.0 + 0.1 * jnp.abs(jax.random.normal(kv, (1, d), jnp.float32))
    scale = gamma / jnp.sqrt(running_var + eps)
    shift = beta - running_mean * scale
    return {"scale": scale, "shift": shift}


def make_params(key, input_size, linear_size, output_size, num_stage):
    keys = jax.random.split(key, 4 + 4 * num_stage)
    ki = iter(keys)
    params = {
        "w1": _linear_params(next(ki), input_size, linear_size),
        "bn1": _bn_params(next(ki), linear_size),
        "stages": [],
        "fc_mu": _linear_params(next(ki), linear_size, output_size),
        "fc_logvar": _linear_params(next(ki), linear_size, output_size),
    }
    for _ in range(num_stage):
        params["stages"].append({
            "w1": _linear_params(next(ki), linear_size, linear_size),
            "bn1": _bn_params(next(ki), linear_size),
            "w2": _linear_params(next(ki), linear_size, linear_size),
            "bn2": _bn_params(next(ki), linear_size),
        })
    return params


# ----------------------------------------------------------------------------
# Pure-JAX f32 reference (un-folded, module semantics) for verification
# ----------------------------------------------------------------------------
def reference_forward(x, params, num_stage):
    y = x @ params["w1"]["W"] + params["w1"]["b"]
    y = jnp.maximum(y * params["bn1"]["scale"] + params["bn1"]["shift"], 0.0)
    for st in params["stages"]:
        h = y @ st["w1"]["W"] + st["w1"]["b"]
        h = jnp.maximum(h * st["bn1"]["scale"] + st["bn1"]["shift"], 0.0)
        h = h @ st["w2"]["W"] + st["w2"]["b"]
        h = jnp.maximum(h * st["bn2"]["scale"] + st["bn2"]["shift"], 0.0)
        y = y + h
    mu = y @ params["fc_mu"]["W"] + params["fc_mu"]["b"]
    logvar = y @ params["fc_logvar"]["W"] + params["fc_logvar"]["b"]
    return mu, logvar


if __name__ == "__main__":
    input_dim = 48
    linear_size = 256
    num_stage = 2
    output_dim = 85
    num_modes = 5
    output_size = output_dim * num_modes  # 425

    key = jax.random.PRNGKey(0)
    kx, kp, kx2, kx3 = jax.random.split(key, 4)
    params = make_params(kp, input_dim, linear_size, output_size, num_stage)
    folded = fold_params(params)

    fwd = jax.jit(functools.partial(
        linear_model_cvae_forward, num_stage=num_stage, out_dim=output_size))

    def check(xb):
        mu, logvar = fwd(xb, folded)
        jax.block_until_ready((mu, logvar))
        mu_ref, lv_ref = reference_forward(xb, params, num_stage)
        assert mu.shape == (xb.shape[0], output_size)
        assert logvar.shape == (xb.shape[0], output_size)
        assert jnp.allclose(mu, mu_ref, atol=5e-2, rtol=5e-2)
        assert jnp.allclose(logvar, lv_ref, atol=5e-2, rtol=5e-2)

    # small batch (single tile, sublane padding path)
    check(jax.random.normal(kx, (8, input_dim), jnp.float32))
    # modest batch (single adaptive tile, 300 -> 304 rows, no 512-row waste)
    check(jax.random.normal(kx2, (300, input_dim), jnp.float32))
    # large batch (multi-tile parallel grid: 3 tiles of 368 rows)
    check(jax.random.normal(kx3, (1100, input_dim), jnp.float32))

    print("KERNEL_OK")
</pallas_src>

<mosaic_0001>
module attributes {stable_mosaic.version = 11 : i64} {
  func.func @kernel(%arg0: i32, %arg1: memref<8x128xbf16, #tpu.memory_space<vmem>>, %arg2: memref<128x256xbf16, #tpu.memory_space<vmem>>, %arg3: memref<256x256xbf16, #tpu.memory_space<vmem>>, %arg4: memref<256x256xbf16, #tpu.memory_space<vmem>>, %arg5: memref<256x256xbf16, #tpu.memory_space<vmem>>, %arg6: memref<256x256xbf16, #tpu.memory_space<vmem>>, %arg7: memref<256x1024xbf16, #tpu.memory_space<vmem>>, %arg8: memref<8x256xf32, #tpu.memory_space<vmem>>, %arg9: memref<1x1024xf32, #tpu.memory_space<vmem>>, %arg10: memref<8x1024xbf16, #tpu.memory_space<vmem>>) attributes {dimension_semantics = [#tpu.dimension_semantics<parallel>], iteration_bounds = array<i64: 1>, scalar_prefetch = 0 : i64, scratch_operands = 0 : i64, tpu.core_type = #tpu.core_type<tc>, window_params = [{transform_indices = @transform_0, window_bounds = array<i64: 8, 128>}, {pipeline_mode = #tpu.pipeline_mode<synchronous>, transform_indices = @transform_1, window_bounds = array<i64: 128, 256>}, {pipeline_mode = #tpu.pipeline_mode<synchronous>, transform_indices = @transform_2, window_bounds = array<i64: 256, 256>}, {pipeline_mode = #tpu.pipeline_mode<synchronous>, transform_indices = @transform_3, window_bounds = array<i64: 256, 256>}, {pipeline_mode = #tpu.pipeline_mode<synchronous>, transform_indices = @transform_4, window_bounds = array<i64: 256, 256>}, {pipeline_mode = #tpu.pipeline_mode<synchronous>, transform_indices = @transform_5, window_bounds = array<i64: 256, 256>}, {pipeline_mode = #tpu.pipeline_mode<synchronous>, transform_indices = @transform_6, window_bounds = array<i64: 256, 1024>}, {pipeline_mode = #tpu.pipeline_mode<synchronous>, transform_indices = @transform_7, window_bounds = array<i64: 8, 256>}, {pipeline_mode = #tpu.pipeline_mode<synchronous>, transform_indices = @transform_8, window_bounds = array<i64: 1, 1024>}, {transform_indices = @transform_9, window_bounds = array<i64: 8, 1024>}]} {
    %c0 = arith.constant 0 : index
    %c0_0 = arith.constant 0 : index
    %0 = vector.load %arg8[%c0, %c0_0] : memref<8x256xf32, #tpu.memory_space<vmem>>, vector<8x256xf32>
    %c0_1 = arith.constant 0 : index
    %c0_2 = arith.constant 0 : index
    %1 = vector.load %arg9[%c0_1, %c0_2] : memref<1x1024xf32, #tpu.memory_space<vmem>>, vector<1x1024xf32>
    %c0_3 = arith.constant 0 : index
    %c0_4 = arith.constant 0 : index
    %2 = vector.load %arg1[%c0_3, %c0_4] : memref<8x128xbf16, #tpu.memory_space<vmem>>, vector<8x128xbf16>
    %c0_5 = arith.constant 0 : index
    %c0_6 = arith.constant 0 : index
    %3 = vector.load %arg2[%c0_5, %c0_6] : memref<128x256xbf16, #tpu.memory_space<vmem>>, vector<128x256xbf16>
    %cst = arith.constant dense<0.000000e+00> : vector<8x256xf32>
    %4 = tpu.matmul %2, %3, %cst {dimension_numbers = #tpu.dot_dimension_numbers<[1], [0], [0], [1], [0, 0, 1, 1], [], []>} : vector<8x128xbf16>, vector<128x256xbf16>, vector<8x256xf32> -> vector<8x256xf32>
    %5 = vector.extract_strided_slice %0 {offsets = [0, 0], sizes = [1, 256], strides = [1, 1]} : vector<8x256xf32> to vector<1x256xf32>
    %6 = vector.broadcast %5 : vector<1x256xf32> to vector<8x256xf32>
    %7 = arith.addf %4, %6 : vector<8x256xf32>
    %cst_7 = arith.constant 0.000000e+00 : f32
    %8 = vector.broadcast %cst_7 : f32 to vector<8x256xf32>
    %9 = arith.maximumf %7, %8 : vector<8x256xf32>
    %10 = arith.truncf %9 : vector<8x256xf32> to vector<8x256xbf16>
    %c0_8 = arith.constant 0 : index
    %c0_9 = arith.constant 0 : index
    %11 = vector.load %arg3[%c0_8, %c0_9] : memref<256x256xbf16, #tpu.memory_space<vmem>>, vector<256x256xbf16>
    %cst_10 = arith.constant dense<0.000000e+00> : vector<8x256xf32>
    %12 = tpu.matmul %10, %11, %cst_10 {dimension_numbers = #tpu.dot_dimension_numbers<[1], [0], [0], [1], [0, 0, 1, 1], [], []>} : vector<8x256xbf16>, vector<256x256xbf16>, vector<8x256xf32> -> vector<8x256xf32>
    %13 = vector.extract_strided_slice %0 {offsets = [1, 0], sizes = [1, 256], strides = [1, 1]} : vector<8x256xf32> to vector<1x256xf32>
    %14 = vector.broadcast %13 : vector<1x256xf32> to vector<8x256xf32>
    %15 = arith.addf %12, %14 : vector<8x256xf32>
    %cst_11 = arith.constant 0.000000e+00 : f32
    %16 = vector.broadcast %cst_11 : f32 to vector<8x256xf32>
    %17 = arith.maximumf %15, %16 : vector<8x256xf32>
    %18 = arith.truncf %17 : vector<8x256xf32> to vector<8x256xbf16>
    %c0_12 = arith.constant 0 : index
    %c0_13 = arith.constant 0 : index
    %19 = vector.load %arg4[%c0_12, %c0_13] : memref<256x256xbf16, #tpu.memory_space<vmem>>, vector<256x256xbf16>
    %cst_14 = arith.constant dense<0.000000e+00> : vector<8x256xf32>
    %20 = tpu.matmul %18, %19, %cst_14 {dimension_numbers = #tpu.dot_dimension_numbers<[1], [0], [0], [1], [0, 0, 1, 1], [], []>} : vector<8x256xbf16>, vector<256x256xbf16>, vector<8x256xf32> -> vector<8x256xf32>
    %21 = vector.extract_strided_slice %0 {offsets = [2, 0], sizes = [1, 256], strides = [1, 1]} : vector<8x256xf32> to vector<1x256xf32>
    %22 = vector.broadcast %21 : vector<1x256xf32> to vector<8x256xf32>
    %23 = arith.addf %20, %22 : vector<8x256xf32>
    %cst_15 = arith.constant 0.000000e+00 : f32
    %24 = vector.broadcast %cst_15 : f32 to vector<8x256xf32>
    %25 = arith.maximumf %23, %24 : vector<8x256xf32>
    %26 = arith.addf %9, %25 : vector<8x256xf32>
    %27 = arith.truncf %26 : vector<8x256xf32> to vector<8x256xbf16>
    %c0_16 = arith.constant 0 : index
    %c0_17 = arith.constant 0 : index
    %28 = vector.load %arg5[%c0_16, %c0_17] : memref<256x256xbf16, #tpu.memory_space<vmem>>, vector<256x256xbf16>
    %cst_18 = arith.constant dense<0.000000e+00> : vector<8x256xf32>
    %29 = tpu.matmul %27, %28, %cst_18 {dimension_numbers = #tpu.dot_dimension_numbers<[1], [0], [0], [1], [0, 0, 1, 1], [], []>} : vector<8x256xbf16>, vector<256x256xbf16>, vector<8x256xf32> -> vector<8x256xf32>
    %30 = vector.extract_strided_slice %0 {offsets = [3, 0], sizes = [1, 256], strides = [1, 1]} : vector<8x256xf32> to vector<1x256xf32>
    %31 = vector.broadcast %30 : vector<1x256xf32> to vector<8x256xf32>
    %32 = arith.addf %29, %31 : vector<8x256xf32>
    %cst_19 = arith.constant 0.000000e+00 : f32
    %33 = vector.broadcast %cst_19 : f32 to vector<8x256xf32>
    %34 = arith.maximumf %32, %33 : vector<8x256xf32>
    %35 = arith.truncf %34 : vector<8x256xf32> to vector<8x256xbf16>
    %c0_20 = arith.constant 0 : index
    %c0_21 = arith.constant 0 : index
    %36 = vector.load %arg6[%c0_20, %c0_21] : memref<256x256xbf16, #tpu.memory_space<vmem>>, vector<256x256xbf16>
    %cst_22 = arith.constant dense<0.000000e+00> : vector<8x256xf32>
    %37 = tpu.matmul %35, %36, %cst_22 {dimension_numbers = #tpu.dot_dimension_numbers<[1], [0], [0], [1], [0, 0, 1, 1], [], []>} : vector<8x256xbf16>, vector<256x256xbf16>, vector<8x256xf32> -> vector<8x256xf32>
    %38 = vector.extract_strided_slice %0 {offsets = [4, 0], sizes = [1, 256], strides = [1, 1]} : vector<8x256xf32> to vector<1x256xf32>
    %39 = vector.broadcast %38 : vector<1x256xf32> to vector<8x256xf32>
    %40 = arith.addf %37, %39 : vector<8x256xf32>
    %cst_23 = arith.constant 0.000000e+00 : f32
    %41 = vector.broadcast %cst_23 : f32 to vector<8x256xf32>
    %42 = arith.maximumf %40, %41 : vector<8x256xf32>
    %43 = arith.addf %26, %42 : vector<8x256xf32>
    %44 = arith.truncf %43 : vector<8x256xf32> to vector<8x256xbf16>
    %c0_24 = arith.constant 0 : index
    %c0_25 = arith.constant 0 : index
    %45 = vector.load %arg7[%c0_24, %c0_25] : memref<256x1024xbf16, #tpu.memory_space<vmem>>, vector<256x1024xbf16>
    %cst_26 = arith.constant dense<0.000000e+00> : vector<8x1024xf32>
    %46 = tpu.matmul %44, %45, %cst_26 {dimension_numbers = #tpu.dot_dimension_numbers<[1], [0], [0], [1], [0, 0, 1, 1], [], []>} : vector<8x256xbf16>, vector<256x1024xbf16>, vector<8x1024xf32> -> vector<8x1024xf32>
    %47 = vector.broadcast %1 : vector<1x1024xf32> to vector<8x1024xf32>
    %48 = arith.addf %46, %47 : vector<8x1024xf32>
    %49 = arith.truncf %48 : vector<8x1024xf32> to vector<8x1024xbf16>
    %c0_27 = arith.constant 0 : index
    %c0_28 = arith.constant 0 : index
    %50 = vector.load %arg10[%c0_27, %c0_28] : memref<8x1024xbf16, #tpu.memory_space<vmem>>, vector<8x1024xbf16>
    tpu.vector_store %arg10[%c0_27, %c0_28], %49 {strides = array<i32>} : memref<8x1024xbf16, #tpu.memory_space<vmem>>, vector<8x1024xbf16>,
    return
  }
  func.func @transform_0(%arg0: i32) -> (i32, i32) {
    %c0_i32 = arith.constant 0 : i32
    %c0_i32_0 = arith.constant 0 : i32
    return %arg0, %c0_i32 : i32, i32
  }
  func.func @transform_1(%arg0: i32) -> (i32, i32) {
    %c0_i32 = arith.constant 0 : i32
    %c0_i32_0 = arith.constant 0 : i32
    %c0_i32_1 = arith.constant 0 : i32
    return %c0_i32, %c0_i32_0 : i32, i32
  }
  func.func @transform_2(%arg0: i32) -> (i32, i32) {
    %c0_i32 = arith.constant 0 : i32
    %c0_i32_0 = arith.constant 0 : i32
    %c0_i32_1 = arith.constant 0 : i32
    return %c0_i32, %c0_i32_0 : i32, i32
  }
  func.func @transform_3(%arg0: i32) -> (i32, i32) {
    %c0_i32 = arith.constant 0 : i32
    %c0_i32_0 = arith.constant 0 : i32
    %c0_i32_1 = arith.constant 0 : i32
    return %c0_i32, %c0_i32_0 : i32, i32
  }
  func.func @transform_4(%arg0: i32) -> (i32, i32) {
    %c0_i32 = arith.constant 0 : i32
    %c0_i32_0 = arith.constant 0 : i32
    %c0_i32_1 = arith.constant 0 : i32
    return %c0_i32, %c0_i32_0 : i32, i32
  }
  func.func @transform_5(%arg0: i32) -> (i32, i32) {
    %c0_i32 = arith.constant 0 : i32
    %c0_i32_0 = arith.constant 0 : i32
    %c0_i32_1 = arith.constant 0 : i32
    return %c0_i32, %c0_i32_0 : i32, i32
  }
  func.func @transform_6(%arg0: i32) -> (i32, i32) {
    %c0_i32 = arith.constant 0 : i32
    %c0_i32_0 = arith.constant 0 : i32
    %c0_i32_1 = arith.constant 0 : i32
    return %c0_i32, %c0_i32_0 : i32, i32
  }
  func.func @transform_7(%arg0: i32) -> (i32, i32) {
    %c0_i32 = arith.constant 0 : i32
    %c0_i32_0 = arith.constant 0 : i32
    %c0_i32_1 = arith.constant 0 : i32
    return %c0_i32, %c0_i32_0 : i32, i32
  }
  func.func @transform_8(%arg0: i32) -> (i32, i32) {
    %c0_i32 = arith.constant 0 : i32
    %c0_i32_0 = arith.constant 0 : i32
    %c0_i32_1 = arith.constant 0 : i32
    return %c0_i32, %c0_i32_0 : i32, i32
  }
  func.func @transform_9(%arg0: i32) -> (i32, i32) {
    %c0_i32 = arith.constant 0 : i32
    %c0_i32_0 = arith.constant 0 : i32
    return %arg0, %c0_i32 : i32, i32
  }
}

</mosaic_0001>

<llo_original>
// kernel: linear_model_cvae_forward.1
$region0: #{linear_model_cvae_forward.1}
  #allocation0 [shape = 'u32[]', space=smem, size = 0x4, offset = 0x4, fixed_abs, tag = 'smem constant byte address 0x4 - core index']
  #allocation1 [shape = 'u32[144,128]{1,0:T(1,128)}', space=vmem, size = 0x12000, scoped, tag = 'internal scratch']
  %s0 = inlined_call_operand.vmem [shape: bf16[8,128], index: 0, kind: input, shape index: {}]
  %s1 = inlined_call_operand.hbm [shape: bf16[128,256], index: 1, kind: input, shape index: {}]
  %s2 = inlined_call_operand.hbm [shape: bf16[256,256], index: 2, kind: input, shape index: {}]
  %s3 = inlined_call_operand.hbm [shape: bf16[256,256], index: 3, kind: input, shape index: {}]
  %s4 = inlined_call_operand.hbm [shape: bf16[256,256], index: 4, kind: input, shape index: {}]
  %s5 = inlined_call_operand.hbm [shape: bf16[256,256], index: 5, kind: input, shape index: {}]
  %s6 = inlined_call_operand.hbm [shape: bf16[256,1024], index: 6, kind: input, shape index: {}]
  %s7 = inlined_call_operand.vmem [shape: f32[8,256], index: 7, kind: input, shape index: {}]
  %s8 = inlined_call_operand.vmem [shape: f32[1,1024], index: 8, kind: input, shape index: {}]
  %s9 = inlined_call_operand.vmem [shape: bf16[8,1024], index: 9, kind: output, shape index: {}]
  %s10 = sld [smem:[#allocation0]]
  $region70: #{linear_model_cvae_forward.1} parent=0
    _
  %s12 = ssub.s32 1, %s10
  %s13 = scalar_select 0, %s12, %s10
  $region1: #{linear_model_cvae_forward.1} parent=0
    #allocation2 [shape = 'u8[65536]{0}', space=vmem, size = 0x10000, scoped, tag = 'input window, operand 1, single buffered']
    #allocation3 [shape = 's32[1]{0}', space=sflag, size = 0x4, scoped, tag = 'scoped memory for linear_model_cvae_forward.1']
    #allocation4 [shape = 'u8[131072]{0}', space=vmem, size = 0x20000, scoped, tag = 'input window, operand 2, single buffered']
    #allocation5 [shape = 's32[1]{0}', space=sflag, size = 0x4, scoped, tag = 'scoped memory for linear_model_cvae_forward.1']
    #allocation6 [shape = 'u8[131072]{0}', space=vmem, size = 0x20000, scoped, tag = 'input window, operand 3, single buffered']
    #allocation7 [shape = 'u8[131072]{0}', space=vmem, size = 0x20000, scoped, tag = 'input window, operand 4, single buffered']
    #allocation8 [shape = 's32[1]{0}', space=sflag, size = 0x4, scoped, tag = 'scoped memory for linear_model_cvae_forward.1']
    #allocation9 [shape = 'u8[131072]{0}', space=vmem, size = 0x20000, scoped, tag = 'input window, operand 5, single buffered']
    #allocation10 [shape = 'u8[524288]{0}', space=vmem, size = 0x80000, scoped, tag = 'input window, operand 6, single buffered']
    #allocation11 [shape = 's32[1]{0}', space=sflag, size = 0x4, scoped, tag = 'scoped memory for linear_model_cvae_forward.1']
    %14 = vsyncpa [#allocation3], 0
    %15 = vsyncpa [#allocation5], 0
    %16 = vsyncpa [#allocation8], 0
    %17 = vsyncpa [#allocation11], 0
    // Predicated region
    $region2: #{linear_model_cvae_forward.1} parent=1 // pred_check
      _
    $region3: #{linear_model_cvae_forward.1} parent=1 // pred_check_branch
      %19 = sbr.rel (0) target = $region5
    $region4: #{linear_model_cvae_forward.1} parent=1 // pred_region
      _
    $region5: #{linear_model_cvae_forward.1} parent=1 // pred_fallthru
      _
    // Predicated region
    $region6: #{linear_model_cvae_forward.1} parent=1 // pred_check
      _
    $region7: #{linear_model_cvae_forward.1} parent=1 // pred_check_branch
      %21 = sbr.rel (0) target = $region9
    $region8: #{linear_model_cvae_forward.1} parent=1 // pred_region
      %s23 = ssub.s32 2048, 2048
      %24 = vsyncadd [#allocation3], %s23
      %s25 = sshll.u32 [#allocation2], 4
      %s26 = int_to_ptr.vmem [resolvable:$true] %s25
      %31 = dma.hbm_to_vmem [thread:$0]  %s1, 2048, %s26, [#allocation3], 128, 128, 8
    $region9: #{linear_model_cvae_forward.1} parent=1 // pred_fallthru
      _
    // Predicated region
    $region10: #{linear_model_cvae_forward.1} parent=1 // pred_check
      _
    $region11: #{linear_model_cvae_forward.1} parent=1 // pred_check_branch
      %33 = sbr.rel (0) target = $region13
    $region12: #{linear_model_cvae_forward.1} parent=1 // pred_region
      %s35 = ssub.s32 4096, 4096
      %36 = vsyncadd [#allocation5], %s35
      %s37 = sshll.u32 [#allocation4], 4
      %s38 = int_to_ptr.vmem [resolvable:$true] %s37
      %43 = dma.hbm_to_vmem [thread:$0]  %s2, 4096, %s38, [#allocation5], 128, 128, 8
    $region13: #{linear_model_cvae_forward.1} parent=1 // pred_fallthru
      _
    // Predicated region
    $region14: #{linear_model_cvae_forward.1} parent=1 // pred_check
      _
    $region15: #{linear_model_cvae_forward.1} parent=1 // pred_check_branch
      %45 = sbr.rel (0) target = $region17
    $region16: #{linear_model_cvae_forward.1} parent=1 // pred_region
      %s47 = ssub.s32 4096, 4096
      %48 = vsyncadd [#allocation5], %s47
      %s49 = sshll.u32 [#allocation6], 4
      %s50 = int_to_ptr.vmem [resolvable:$true] %s49
      %55 = dma.hbm_to_vmem [thread:$0]  %s3, 4096, %s50, [#allocation5], 128, 128, 8
    $region17: #{linear_model_cvae_forward.1} parent=1 // pred_fallthru
      _
    // Predicated region
    $region18: #{linear_model_cvae_forward.1} parent=1 // pred_check
      _
    $region19: #{linear_model_cvae_forward.1} parent=1 // pred_check_branch
      %57 = sbr.rel (0) target = $region21
    $region20: #{linear_model_cvae_forward.1} parent=1 // pred_region
      %s59 = ssub.s32 4096, 4096
      %60 = vsyncadd [#allocation8], %s59
      %s61 = sshll.u32 [#allocation7], 4
      %s62 = int_to_ptr.vmem [resolvable:$true] %s61
      %67 = dma.hbm_to_vmem [thread:$0]  %s4, 4096, %s62, [#allocation8], 128, 128, 8
    $region21: #{linear_model_cvae_forward.1} parent=1 // pred_fallthru
      _
    // Predicated region
    $region22: #{linear_model_cvae_forward.1} parent=1 // pred_check
      _
    $region23: #{linear_model_cvae_forward.1} parent=1 // pred_check_branch
      %69 = sbr.rel (0) target = $region25
    $region24: #{linear_model_cvae_forward.1} parent=1 // pred_region
      %s71 = ssub.s32 4096, 4096
      %72 = vsyncadd [#allocation8], %s71
      %s73 = sshll.u32 [#allocation9], 4
      %s74 = int_to_ptr.vmem [resolvable:$true] %s73
      %79 = dma.hbm_to_vmem [thread:$0]  %s5, 4096, %s74, [#allocation8], 128, 128, 8
    $region25: #{linear_model_cvae_forward.1} parent=1 // pred_fallthru
      _
    // Predicated region
    $region26: #{linear_model_cvae_forward.1} parent=1 // pred_check
      _
    $region27: #{linear_model_cvae_forward.1} parent=1 // pred_check_branch
      %81 = sbr.rel (0) target = $region29
    $region28: #{linear_model_cvae_forward.1} parent=1 // pred_region
      %s83 = ssub.s32 16384, 16384
      %84 = vsyncadd [#allocation11], %s83
      %s85 = sshll.u32 [#allocation10], 4
      %s86 = int_to_ptr.vmem [resolvable:$true] %s85
      %91 = dma.hbm_to_vmem [thread:$0]  %s6, 16384, %s86, [#allocation11], 512, 512, 32
    $region29: #{linear_model_cvae_forward.1} parent=1 // pred_fallthru
      _
    // Predicated region
    $region30: #{linear_model_cvae_forward.1} parent=1 // pred_check
      _
    $region31: #{linear_model_cvae_forward.1} parent=1 // pred_check_branch
      %93 = sbr.rel (0) target = $region33
    $region32: #{linear_model_cvae_forward.1} parent=1 // pred_region
      _
    $region33: #{linear_model_cvae_forward.1} parent=1 // pred_fallthru
      _
    // Predicated region
    $region34: #{linear_model_cvae_forward.1} parent=1 // pred_check
      _
    $region35: #{linear_model_cvae_forward.1} parent=1 // pred_check_branch
      %95 = sbr.rel (0) target = $region37
    $region36: #{linear_model_cvae_forward.1} parent=1 // pred_region
      _
    $region37: #{linear_model_cvae_forward.1} parent=1 // pred_fallthru
      _
    // Predicated region
    $region38: #{linear_model_cvae_forward.1} parent=1 // pred_check
      _
    $region39: #{linear_model_cvae_forward.1} parent=1 // pred_check_branch
      %97 = sbr.rel (0) target = $region41
    $region40: #{linear_model_cvae_forward.1} parent=1 // pred_region
      %98 = dma.done [#allocation3], 2048
    $region41: #{linear_model_cvae_forward.1} parent=1 // pred_fallthru
      _
    // Predicated region
    $region42: #{linear_model_cvae_forward.1} parent=1 // pred_check
      _
    $region43: #{linear_model_cvae_forward.1} parent=1 // pred_check_branch
      %100 = sbr.rel (0) target = $region45
    $region44: #{linear_model_cvae_forward.1} parent=1 // pred_region
      %101 = dma.done [#allocation5], 4096
    $region45: #{linear_model_cvae_forward.1} parent=1 // pred_fallthru
      _
    // Predicated region
    $region46: #{linear_model_cvae_forward.1} parent=1 // pred_check
      _
    $region47: #{linear_model_cvae_forward.1} parent=1 // pred_check_branch
      %103 = sbr.rel (0) target = $region49
    $region48: #{linear_model_cvae_forward.1} parent=1 // pred_region
      %104 = dma.done [#allocation5], 4096
    $region49: #{linear_model_cvae_forward.1} parent=1 // pred_fallthru
      _
    // Predicated region
    $region50: #{linear_model_cvae_forward.1} parent=1 // pred_check
      _
    $region51: #{linear_model_cvae_forward.1} parent=1 // pred_check_branch
      %106 = sbr.rel (0) target = $region53
    $region52: #{linear_model_cvae_forward.1} parent=1 // pred_region
      %107 = dma.done [#allocation8], 4096
    $region53: #{linear_model_cvae_forward.1} parent=1 // pred_fallthru
      _
    // Predicated region
    $region54: #{linear_model_cvae_forward.1} parent=1 // pred_check
      _
    $region55: #{linear_model_cvae_forward.1} parent=1 // pred_check_branch
      %109 = sbr.rel (0) target = $region57
    $region56: #{linear_model_cvae_forward.1} parent=1 // pred_region
      %110 = dma.done [#allocation8], 4096
    $region57: #{linear_model_cvae_forward.1} parent=1 // pred_fallthru
      _
    // Predicated region
    $region58: #{linear_model_cvae_forward.1} parent=1 // pred_check
      _
    $region59: #{linear_model_cvae_forward.1} parent=1 // pred_check_branch
      %112 = sbr.rel (0) target = $region61
    $region60: #{linear_model_cvae_forward.1} parent=1 // pred_region
      %113 = dma.done [#allocation11], 16384
    $region61: #{linear_model_cvae_forward.1} parent=1 // pred_fallthru
      _
    %v115 = vld [vmem:[%s7] sm:$0xff]
    %v116 = vld [vmem:[%s7 + $0x8] sm:$0xff]
    %v117 = vld [vmem:[%s8] sm:$0xff]
    %v118 = vld [vmem:[%s0] sm:$0xf]
    %v119 = vld [vmem:[#allocation2] sm:$0xff]
    %v120 = vld [vmem:[#allocation2 + $0x8] sm:$0xff]
    %v121 = vld [vmem:[#allocation2 + $0x10] sm:$0xff]
    %v122 = vld [vmem:[#allocation2 + $0x18] sm:$0xff]
    %v123 = vld [vmem:[#allocation2 + $0x20] sm:$0xff]
    %v124 = vld [vmem:[#allocation2 + $0x28] sm:$0xff]
    %v125 = vld [vmem:[#allocation2 + $0x30] sm:$0xff]
    %v126 = vld [vmem:[#allocation2 + $0x38] sm:$0xff]
    %v127 = vld [vmem:[#allocation2 + $0x40] sm:$0xff]
    %v128 = vld [vmem:[#allocation2 + $0x48] sm:$0xff]
    %v129 = vld [vmem:[#allocation2 + $0x50] sm:$0xff]
    %v130 = vld [vmem:[#allocation2 + $0x58] sm:$0xff]
    %v131 = vld [vmem:[#allocation2 + $0x60] sm:$0xff]
    %v132 = vld [vmem:[#allocation2 + $0x68] sm:$0xff]
    %v133 = vld [vmem:[#allocation2 + $0x70] sm:$0xff]
    %v134 = vld [vmem:[#allocation2 + $0x78] sm:$0xff]
    %v135 = vlaneseq
    %v136 = vshrl.u32 %v135, 7
    %v137 = vsub.s32 0, %v136
    %v138 = vrot.slane %v115, %v137
    %v139 = vlaneseq
    %v140 = vshrl.u32 %v139, 7
    %v141 = vsub.s32 0, %v140
    %v142 = vrot.slane %v116, %v141
    %v159 = vunpack.c.l.b16 %v119
    %v160 = vunpack.c.h.b16 %v119
    %v161 = vunpack.c.l.b16 %v120
    %v162 = vunpack.c.h.b16 %v120
    %v163 = vunpack.c.l.b16 %v121
    %v164 = vunpack.c.h.b16 %v121
    %v165 = vunpack.c.l.b16 %v122
    %v166 = vunpack.c.h.b16 %v122
    %v167 = vunpack.c.l.b16 %v123
    %v168 = vunpack.c.h.b16 %v123
    %v169 = vunpack.c.l.b16 %v124
    %v170 = vunpack.c.h.b16 %v124
    %v171 = vunpack.c.l.b16 %v125
    %v172 = vunpack.c.h.b16 %v125
    %v173 = vunpack.c.l.b16 %v126
    %v174 = vunpack.c.h.b16 %v126
    %v175 = vunpack.c.l.b16 %v127
    %v176 = vunpack.c.h.b16 %v127
    %v177 = vunpack.c.l.b16 %v128
    %v178 = vunpack.c.h.b16 %v128
    %v179 = vunpack.c.l.b16 %v129
    %v180 = vunpack.c.h.b16 %v129
    %v181 = vunpack.c.l.b16 %v130
    %v182 = vunpack.c.h.b16 %v130
    %v183 = vunpack.c.l.b16 %v131
    %v184 = vunpack.c.h.b16 %v131
    %v185 = vunpack.c.l.b16 %v132
    %v186 = vunpack.c.h.b16 %v132
    %v187 = vunpack.c.l.b16 %v133
    %v188 = vunpack.c.h.b16 %v133
    %v189 = vunpack.c.l.b16 %v134
    %v190 = vunpack.c.h.b16 %v134
    %v191 = vpack.c.b16 %v161, %v159
    %v192 = vpack.c.b16 %v162, %v160
    %v193 = vpack.c.b16 %v165, %v163
    %v194 = vpack.c.b16 %v166, %v164
    %v195 = vpack.c.b16 %v169, %v167
    %v196 = vpack.c.b16 %v170, %v168
    %v197 = vpack.c.b16 %v173, %v171
    %v198 = vpack.c.b16 %v174, %v172
    %v199 = vpack.c.b16 %v177, %v175
    %v200 = vpack.c.b16 %v178, %v176
    %v201 = vpack.c.b16 %v181, %v179
    %v202 = vpack.c.b16 %v182, %v180
    %v203 = vpack.c.b16 %v185, %v183
    %v204 = vpack.c.b16 %v186, %v184
    %v205 = vpack.c.b16 %v189, %v187
    %v206 = vpack.c.b16 %v190, %v188
    %223 = vmatprep.subr.bf16.mxu0 %v206
    %224 = vmatpush1.bf16.msra.mxu0 %v205
    %225 = vmatprep.subr.bf16.mxu0 %v204
    %226 = vmatpush1.bf16.msra.mxu0 %v203
    %227 = vmatprep.subr.bf16.mxu0 %v202
    %228 = vmatpush1.bf16.msra.mxu0 %v201
    %229 = vmatprep.subr.bf16.mxu0 %v200
    %230 = vmatpush1.bf16.msra.mxu0 %v199
    %231 = vmatprep.subr.bf16.mxu0 %v198
    %232 = vmatpush1.bf16.msra.mxu0 %v197
    %233 = vmatprep.subr.bf16.mxu0 %v196
    %234 = vmatpush1.bf16.msra.mxu0 %v195
    %235 = vmatprep.subr.bf16.mxu0 %v194
    %236 = vmatpush1.bf16.msra.mxu0 %v193
    %237 = vmatprep.subr.bf16.mxu0 %v192
    %238 = vmatpush1.bf16.msra.mxu0 %v191
    %239 = vmatprep.subr.bf16.mxu0 0
    %240 = vmatpush2.bf16.msra.mxu0 0
    %241 = vmatprep.subr.bf16.mxu0 0
    %242 = vmatpush2.bf16.msra.mxu0 0
    %243 = vmatprep.subr.bf16.mxu0 0
    %244 = vmatpush2.bf16.msra.mxu0 0
    %245 = vmatprep.subr.bf16.mxu0 0
    %246 = vmatpush2.bf16.msra.mxu0 0
    %247 = vmatprep.subr.bf16.mxu0 0
    %248 = vmatpush2.bf16.msra.mxu0 0
    %249 = vmatprep.subr.bf16.mxu0 0
    %250 = vmatpush2.bf16.msra.mxu0 0
    %251 = vmatprep.subr.bf16.mxu0 0
    %252 = vmatpush2.bf16.msra.mxu0 0
    %253 = vmatprep.subr.bf16.mxu0 0
    %254 = vmatpush2.bf16.msra.mxu0 0
    %255 = vmatprep.mubr.bf16.mxu0 0
    %256 = vmatmul.mubr.bf16.gmra.mxu0 %v118
    %v257 = vpop.f32.mrf.mxu0
    %v258 = vadd.f32 %v138, %v257
    %v259 = vpop.f32.mrf.mxu0
    %v260 = vadd.f32 %v142, %v259
    %v261 = vpop.f32.mrf.mxu0
    %v262 = vpop.f32.mrf.mxu0
    %263 = vdwg.mxu0
    %v264 = vmax.f32 %v258, 0.0
    %v265 = vmax.f32 %v260, 0.0
    %v266 = vpack.c.bf16 %v264, %v264
    %v267 = vpack.c.bf16 %v265, %v265
    %v268 = vld [vmem:[#allocation4] sm:$0xff]
    %v269 = vld [vmem:[#allocation4 + $0x8] sm:$0xff]
    %v270 = vld [vmem:[#allocation4 + $0x10] sm:$0xff]
    %v271 = vld [vmem:[#allocation4 + $0x18] sm:$0xff]
    %v272 = vld [vmem:[#allocation4 + $0x20] sm:$0xff]
    %v273 = vld [vmem:[#allocation4 + $0x28] sm:$0xff]
    %v274 = vld [vmem:[#allocation4 + $0x30] sm:$0xff]
    %v275 = vld [vmem:[#allocation4 + $0x38] sm:$0xff]
    %v276 = vld [vmem:[#allocation4 + $0x40] sm:$0xff]
    %v277 = vld [vmem:[#allocation4 + $0x48] sm:$0xff]
    %v278 = vld [vmem:[#allocation4 + $0x50] sm:$0xff]
    %v279 = vld [vmem:[#allocation4 + $0x58] sm:$0xff]
    %v280 = vld [vmem:[#allocation4 + $0x60] sm:$0xff]
    %v281 = vld [vmem:[#allocation4 + $0x68] sm:$0xff]
    %v282 = vld [vmem:[#allocation4 + $0x70] sm:$0xff]
    %v283 = vld [vmem:[#allocation4 + $0x78] sm:$0xff]
    %v284 = vld [vmem:[#allocation4 + $0x80] sm:$0xff]
    %v285 = vld [vmem:[#allocation4 + $0x88] sm:$0xff]
    %v286 = vld [vmem:[#allocation4 + $0x90] sm:$0xff]
    %v287 = vld [vmem:[#allocation4 + $0x98] sm:$0xff]
    %v288 = vld [vmem:[#allocation4 + $0xa0] sm:$0xff]
    %v289 = vld [vmem:[#allocation4 + $0xa8] sm:$0xff]
    %v290 = vld [vmem:[#allocation4 + $0xb0] sm:$0xff]
    %v291 = vld [vmem:[#allocation4 + $0xb8] sm:$0xff]
    %v292 = vld [vmem:[#allocation4 + $0xc0] sm:$0xff]
    %v293 = vld [vmem:[#allocation4 + $0xc8] sm:$0xff]
    %v294 = vld [vmem:[#allocation4 + $0xd0] sm:$0xff]
    %v295 = vld [vmem:[#allocation4 + $0xd8] sm:$0xff]
    %v296 = vld [vmem:[#allocation4 + $0xe0] sm:$0xff]
    %v297 = vld [vmem:[#allocation4 + $0xe8] sm:$0xff]
    %v298 = vld [vmem:[#allocation4 + $0xf0] sm:$0xff]
    %v299 = vld [vmem:[#allocation4 + $0xf8] sm:$0xff]
    %v300 = vlaneseq
    %v301 = vshrl.u32 %v300, 7
    %v302 = vsub.s32 1, %v301
    %v303 = vrot.slane %v115, %v302
    %v304 = vlaneseq
    %v305 = vshrl.u32 %v304, 7
    %v306 = vsub.s32 1, %v305
    %v307 = vrot.slane %v116, %v306
    %v340 = vunpack.c.l.b16 %v268
    %v341 = vunpack.c.h.b16 %v268
    %v342 = vunpack.c.l.b16 %v269
    %v343 = vunpack.c.h.b16 %v269
    %v344 = vunpack.c.l.b16 %v270
    %v345 = vunpack.c.h.b16 %v270
    %v346 = vunpack.c.l.b16 %v271
    %v347 = vunpack.c.h.b16 %v271
    %v348 = vunpack.c.l.b16 %v272
    %v349 = vunpack.c.h.b16 %v272
    %v350 = vunpack.c.l.b16 %v273
    %v351 = vunpack.c.h.b16 %v273
    %v352 = vunpack.c.l.b16 %v274
    %v353 = vunpack.c.h.b16 %v274
    %v354 = vunpack.c.l.b16 %v275
    %v355 = vunpack.c.h.b16 %v275
    %v356 = vunpack.c.l.b16 %v276
    %v357 = vunpack.c.h.b16 %v276
    %v358 = vunpack.c.l.b16 %v277
    %v359 = vunpack.c.h.b16 %v277
    %v360 = vunpack.c.l.b16 %v278
    %v361 = vunpack.c.h.b16 %v278
    %v362 = vunpack.c.l.b16 %v279
    %v363 = vunpack.c.h.b16 %v279
    %v364 = vunpack.c.l.b16 %v280
    %v365 = vunpack.c.h.b16 %v280
    %v366 = vunpack.c.l.b16 %v281
    %v367 = vunpack.c.h.b16 %v281
    %v368 = vunpack.c.l.b16 %v282
    %v369 = vunpack.c.h.b16 %v282
    %v370 = vunpack.c.l.b16 %v283
    %v371 = vunpack.c.h.b16 %v283
    %v372 = vunpack.c.l.b16 %v284
    %v373 = vunpack.c.h.b16 %v284
    %v374 = vunpack.c.l.b16 %v285
    %v375 = vunpack.c.h.b16 %v285
    %v376 = vunpack.c.l.b16 %v286
    %v377 = vunpack.c.h.b16 %v286
    %v378 = vunpack.c.l.b16 %v287
    %v379 = vunpack.c.h.b16 %v287
    %v380 = vunpack.c.l.b16 %v288
    %v381 = vunpack.c.h.b16 %v288
    %v382 = vunpack.c.l.b16 %v289
    %v383 = vunpack.c.h.b16 %v289
    %v384 = vunpack.c.l.b16 %v290
    %v385 = vunpack.c.h.b16 %v290
    %v386 = vunpack.c.l.b16 %v291
    %v387 = vunpack.c.h.b16 %v291
    %v388 = vunpack.c.l.b16 %v292
    %v389 = vunpack.c.h.b16 %v292
    %v390 = vunpack.c.l.b16 %v293
    %v391 = vunpack.c.h.b16 %v293
    %v392 = vunpack.c.l.b16 %v294
    %v393 = vunpack.c.h.b16 %v294
    %v394 = vunpack.c.l.b16 %v295
    %v395 = vunpack.c.h.b16 %v295
    %v396 = vunpack.c.l.b16 %v296
    %v397 = vunpack.c.h.b16 %v296
    %v398 = vunpack.c.l.b16 %v297
    %v399 = vunpack.c.h.b16 %v297
    %v400 = vunpack.c.l.b16 %v298
    %v401 = vunpack.c.h.b16 %v298
    %v402 = vunpack.c.l.b16 %v299
    %v403 = vunpack.c.h.b16 %v299
    %v404 = vpack.c.b16 %v342, %v340
    %v405 = vpack.c.b16 %v343, %v341
    %v406 = vpack.c.b16 %v346, %v344
    %v407 = vpack.c.b16 %v347, %v345
    %v408 = vpack.c.b16 %v350, %v348
    %v409 = vpack.c.b16 %v351, %v349
    %v410 = vpack.c.b16 %v354, %v352
    %v411 = vpack.c.b16 %v355, %v353
    %v412 = vpack.c.b16 %v358, %v356
    %v413 = vpack.c.b16 %v359, %v357
    %v414 = vpack.c.b16 %v362, %v360
    %v415 = vpack.c.b16 %v363, %v361
    %v416 = vpack.c.b16 %v366, %v364
    %v417 = vpack.c.b16 %v367, %v365
    %v418 = vpack.c.b16 %v370, %v368
    %v419 = vpack.c.b16 %v371, %v369
    %v420 = vpack.c.b16 %v374, %v372
    %v421 = vpack.c.b16 %v375, %v373
    %v422 = vpack.c.b16 %v378, %v376
    %v423 = vpack.c.b16 %v379, %v377
    %v424 = vpack.c.b16 %v382, %v380
    %v425 = vpack.c.b16 %v383, %v381
    %v426 = vpack.c.b16 %v386, %v384
    %v427 = vpack.c.b16 %v387, %v385
    %v428 = vpack.c.b16 %v390, %v388
    %v429 = vpack.c.b16 %v391, %v389
    %v430 = vpack.c.b16 %v394, %v392
    %v431 = vpack.c.b16 %v395, %v393
    %v432 = vpack.c.b16 %v398, %v396
    %v433 = vpack.c.b16 %v399, %v397
    %v434 = vpack.c.b16 %v402, %v400
    %v435 = vpack.c.b16 %v403, %v401
    %468 = vmatprep.subr.bf16.mxu0 %v419
    %469 = vmatpush1.bf16.msra.mxu0 %v418
    %470 = vmatprep.subr.bf16.mxu0 %v417
    %471 = vmatpush1.bf16.msra.mxu0 %v416
    %472 = vmatprep.subr.bf16.mxu0 %v415
    %473 = vmatpush1.bf16.msra.mxu0 %v414
    %474 = vmatprep.subr.bf16.mxu0 %v413
    %475 = vmatpush1.bf16.msra.mxu0 %v412
    %476 = vmatprep.subr.bf16.mxu0 %v411
    %477 = vmatpush1.bf16.msra.mxu0 %v410
    %478 = vmatprep.subr.bf16.mxu0 %v409
    %479 = vmatpush1.bf16.msra.mxu0 %v408
    %480 = vmatprep.subr.bf16.mxu0 %v407
    %481 = vmatpush1.bf16.msra.mxu0 %v406
    %482 = vmatprep.subr.bf16.mxu0 %v405
    %483 = vmatpush1.bf16.msra.mxu0 %v404
    %484 = vmatprep.subr.bf16.mxu0 %v435
    %485 = vmatpush2.bf16.msra.mxu0 %v434
    %486 = vmatprep.subr.bf16.mxu0 %v433
    %487 = vmatpush2.bf16.msra.mxu0 %v432
    %488 = vmatprep.subr.bf16.mxu0 %v431
    %489 = vmatpush2.bf16.msra.mxu0 %v430
    %490 = vmatprep.subr.bf16.mxu0 %v429
    %491 = vmatpush2.bf16.msra.mxu0 %v428
    %492 = vmatprep.subr.bf16.mxu0 %v427
    %493 = vmatpush2.bf16.msra.mxu0 %v426
    %494 = vmatprep.subr.bf16.mxu0 %v425
    %495 = vmatpush2.bf16.msra.mxu0 %v424
    %496 = vmatprep.subr.bf16.mxu0 %v423
    %497 = vmatpush2.bf16.msra.mxu0 %v422
    %498 = vmatprep.subr.bf16.mxu0 %v421
    %499 = vmatpush2.bf16.msra.mxu0 %v420
    %500 = vmatprep.mubr.bf16.mxu0 %v267
    %501 = vmatmul.mubr.bf16.gmra.mxu0 %v266
    %v502 = vpop.f32.mrf.mxu0
    %v503 = vadd.f32 %v303, %v502
    %v504 = vpop.f32.mrf.mxu0
    %v505 = vadd.f32 %v307, %v504
    %v506 = vpop.f32.mrf.mxu0
    %v507 = vpop.f32.mrf.mxu0
    %508 = vdwg.mxu0
    %v509 = vmax.f32 %v503, 0.0
    %v510 = vmax.f32 %v505, 0.0
    %v511 = vpack.c.bf16 %v509, %v509
    %v512 = vpack.c.bf16 %v510, %v510
    %v513 = vld [vmem:[#allocation6] sm:$0xff]
    %v514 = vld [vmem:[#allocation6 + $0x8] sm:$0xff]
    %v515 = vld [vmem:[#allocation6 + $0x10] sm:$0xff]
    %v516 = vld [vmem:[#allocation6 + $0x18] sm:$0xff]
    %v517 = vld [vmem:[#allocation6 + $0x20] sm:$0xff]
    %v518 = vld [vmem:[#allocation6 + $0x28] sm:$0xff]
    %v519 = vld [vmem:[#allocation6 + $0x30] sm:$0xff]
    %v520 = vld [vmem:[#allocation6 + $0x38] sm:$0xff]
    %v521 = vld [vmem:[#allocation6 + $0x40] sm:$0xff]
    %v522 = vld [vmem:[#allocation6 + $0x48] sm:$0xff]
    %v523 = vld [vmem:[#allocation6 + $0x50] sm:$0xff]
    %v524 = vld [vmem:[#allocation6 + $0x58] sm:$0xff]
    %v525 = vld [vmem:[#allocation6 + $0x60] sm:$0xff]
    %v526 = vld [vmem:[#allocation6 + $0x68] sm:$0xff]
    %v527 = vld [vmem:[#allocation6 + $0x70] sm:$0xff]
    %v528 = vld [vmem:[#allocation6 + $0x78] sm:$0xff]
    %v529 = vld [vmem:[#allocation6 + $0x80] sm:$0xff]
    %v530 = vld [vmem:[#allocation6 + $0x88] sm:$0xff]
    %v531 = vld [vmem:[#allocation6 + $0x90] sm:$0xff]
    %v532 = vld [vmem:[#allocation6 + $0x98] sm:$0xff]
    %v533 = vld [vmem:[#allocation6 + $0xa0] sm:$0xff]
    %v534 = vld [vmem:[#allocation6 + $0xa8] sm:$0xff]
    %v535 = vld [vmem:[#allocation6 + $0xb0] sm:$0xff]
    %v536 = vld [vmem:[#allocation6 + $0xb8] sm:$0xff]
    %v537 = vld [vmem:[#allocation6 + $0xc0] sm:$0xff]
    %v538 = vld [vmem:[#allocation6 + $0xc8] sm:$0xff]
    %v539 = vld [vmem:[#allocation6 + $0xd0] sm:$0xff]
    %v540 = vld [vmem:[#allocation6 + $0xd8] sm:$0xff]
    %v541 = vld [vmem:[#allocation6 + $0xe0] sm:$0xff]
    %v542 = vld [vmem:[#allocation6 + $0xe8] sm:$0xff]
    %v543 = vld [vmem:[#allocation6 + $0xf0] sm:$0xff]
    %v544 = vld [vmem:[#allocation6 + $0xf8] sm:$0xff]
    %v545 = vlaneseq
    %v546 = vshrl.u32 %v545, 7
    %v547 = vsub.s32 2, %v546
    %v548 = vrot.slane %v115, %v547
    %v549 = vlaneseq
    %v550 = vshrl.u32 %v549, 7
    %v551 = vsub.s32 2, %v550
    %v552 = vrot.slane %v116, %v551
    %v585 = vunpack.c.l.b16 %v513
    %v586 = vunpack.c.h.b16 %v513
    %v587 = vunpack.c.l.b16 %v514
    %v588 = vunpack.c.h.b16 %v514
    %v589 = vunpack.c.l.b16 %v515
    %v590 = vunpack.c.h.b16 %v515
    %v591 = vunpack.c.l.b16 %v516
    %v592 = vunpack.c.h.b16 %v516
    %v593 = vunpack.c.l.b16 %v517
    %v594 = vunpack.c.h.b16 %v517
    %v595 = vunpack.c.l.b16 %v518
    %v596 = vunpack.c.h.b16 %v518
    %v597 = vunpack.c.l.b16 %v519
    %v598 = vunpack.c.h.b16 %v519
    %v599 = vunpack.c.l.b16 %v520
    %v600 = vunpack.c.h.b16 %v520
    %v601 = vunpack.c.l.b16 %v521
    %v602 = vunpack.c.h.b16 %v521
    %v603 = vunpack.c.l.b16 %v522
    %v604 = vunpack.c.h.b16 %v522
    %v605 = vunpack.c.l.b16 %v523
    %v606 = vunpack.c.h.b16 %v523
    %v607 = vunpack.c.l.b16 %v524
    %v608 = vunpack.c.h.b16 %v524
    %v609 = vunpack.c.l.b16 %v525
    %v610 = vunpack.c.h.b16 %v525
    %v611 = vunpack.c.l.b16 %v526
    %v612 = vunpack.c.h.b16 %v526
    %v613 = vunpack.c.l.b16 %v527
    %v614 = vunpack.c.h.b16 %v527
    %v615 = vunpack.c.l.b16 %v528
    %v616 = vunpack.c.h.b16 %v528
    %v617 = vunpack.c.l.b16 %v529
    %v618 = vunpack.c.h.b16 %v529
    %v619 = vunpack.c.l.b16 %v530
    %v620 = vunpack.c.h.b16 %v530
    %v621 = vunpack.c.l.b16 %v531
    %v622 = vunpack.c.h.b16 %v531
    %v623 = vunpack.c.l.b16 %v532
    %v624 = vunpack.c.h.b16 %v532
    %v625 = vunpack.c.l.b16 %v533
    %v626 = vunpack.c.h.b16 %v533
    %v627 = vunpack.c.l.b16 %v534
    %v628 = vunpack.c.h.b16 %v534
    %v629 = vunpack.c.l.b16 %v535
    %v630 = vunpack.c.h.b16 %v535
    %v631 = vunpack.c.l.b16 %v536
    %v632 = vunpack.c.h.b16 %v536
    %v633 = vunpack.c.l.b16 %v537
    %v634 = vunpack.c.h.b16 %v537
    %v635 = vunpack.c.l.b16 %v538
    %v636 = vunpack.c.h.b16 %v538
    %v637 = vunpack.c.l.b16 %v539
    %v638 = vunpack.c.h.b16 %v539
    %v639 = vunpack.c.l.b16 %v540
    %v640 = vunpack.c.h.b16 %v540
    %v641 = vunpack.c.l.b16 %v541
    %v642 = vunpack.c.h.b16 %v541
    %v643 = vunpack.c.l.b16 %v542
    %v644 = vunpack.c.h.b16 %v542
    %v645 = vunpack.c.l.b16 %v543
    %v646 = vunpack.c.h.b16 %v543
    %v647 = vunpack.c.l.b16 %v544
    %v648 = vunpack.c.h.b16 %v544
    %v649 = vpack.c.b16 %v587, %v585
    %v650 = vpack.c.b16 %v588, %v586
    %v651 = vpack.c.b16 %v591, %v589
    %v652 = vpack.c.b16 %v592, %v590
    %v653 = vpack.c.b16 %v595, %v593
    %v654 = vpack.c.b16 %v596, %v594
    %v655 = vpack.c.b16 %v599, %v597
    %v656 = vpack.c.b16 %v600, %v598
    %v657 = vpack.c.b16 %v603, %v601
    %v658 = vpack.c.b16 %v604, %v602
    %v659 = vpack.c.b16 %v607, %v605
    %v660 = vpack.c.b16 %v608, %v606
    %v661 = vpack.c.b16 %v611, %v609
    %v662 = vpack.c.b16 %v612, %v610
    %v663 = vpack.c.b16 %v615, %v613
    %v664 = vpack.c.b16 %v616, %v614
    %v665 = vpack.c.b16 %v619, %v617
    %v666 = vpack.c.b16 %v620, %v618
    %v667 = vpack.c.b16 %v623, %v621
    %v668 = vpack.c.b16 %v624, %v622
    %v669 = vpack.c.b16 %v627, %v625
    %v670 = vpack.c.b16 %v628, %v626
    %v671 = vpack.c.b16 %v631, %v629
    %v672 = vpack.c.b16 %v632, %v630
    %v673 = vpack.c.b16 %v635, %v633
    %v674 = vpack.c.b16 %v636, %v634
    %v675 = vpack.c.b16 %v639, %v637
    %v676 = vpack.c.b16 %v640, %v638
    %v677 = vpack.c.b16 %v643, %v641
    %v678 = vpack.c.b16 %v644, %v642
    %v679 = vpack.c.b16 %v647, %v645
    %v680 = vpack.c.b16 %v648, %v646
    %713 = vmatprep.subr.bf16.mxu0 %v664
    %714 = vmatpush1.bf16.msra.mxu0 %v663
    %715 = vmatprep.subr.bf16.mxu0 %v662
    %716 = vmatpush1.bf16.msra.mxu0 %v661
    %717 = vmatprep.subr.bf16.mxu0 %v660
    %718 = vmatpush1.bf16.msra.mxu0 %v659
    %719 = vmatprep.subr.bf16.mxu0 %v658
    %720 = vmatpush1.bf16.msra.mxu0 %v657
    %721 = vmatprep.subr.bf16.mxu0 %v656
    %722 = vmatpush1.bf16.msra.mxu0 %v655
    %723 = vmatprep.subr.bf16.mxu0 %v654
    %724 = vmatpush1.bf16.msra.mxu0 %v653
    %725 = vmatprep.subr.bf16.mxu0 %v652
    %726 = vmatpush1.bf16.msra.mxu0 %v651
    %727 = vmatprep.subr.bf16.mxu0 %v650
    %728 = vmatpush1.bf16.msra.mxu0 %v649
    %729 = vmatprep.subr.bf16.mxu0 %v680
    %730 = vmatpush2.bf16.msra.mxu0 %v679
    %731 = vmatprep.subr.bf16.mxu0 %v678
    %732 = vmatpush2.bf16.msra.mxu0 %v677
    %733 = vmatprep.subr.bf16.mxu0 %v676
    %734 = vmatpush2.bf16.msra.mxu0 %v675
    %735 = vmatprep.subr.bf16.mxu0 %v674
    %736 = vmatpush2.bf16.msra.mxu0 %v673
    %737 = vmatprep.subr.bf16.mxu0 %v672
    %738 = vmatpush2.bf16.msra.mxu0 %v671
    %739 = vmatprep.subr.bf16.mxu0 %v670
    %740 = vmatpush2.bf16.msra.mxu0 %v669
    %741 = vmatprep.subr.bf16.mxu0 %v668
    %742 = vmatpush2.bf16.msra.mxu0 %v667
    %743 = vmatprep.subr.bf16.mxu0 %v666
    %744 = vmatpush2.bf16.msra.mxu0 %v665
    %745 = vmatprep.mubr.bf16.mxu0 %v512
    %746 = vmatmul.mubr.bf16.gmra.mxu0 %v511
    %v747 = vpop.f32.mrf.mxu0
    %v748 = vadd.f32 %v548, %v747
    %v749 = vpop.f32.mrf.mxu0
    %v750 = vadd.f32 %v552, %v749
    %v751 = vpop.f32.mrf.mxu0
    %v752 = vpop.f32.mrf.mxu0
    %753 = vdwg.mxu0
    %v754 = vmax.f32 %v748, 0.0
    %v755 = vmax.f32 %v750, 0.0
    %v756 = vadd.f32 %v264, %v754
    %v757 = vadd.f32 %v265, %v755
    %v758 = vpack.c.bf16 %v756, %v756
    %v759 = vpack.c.bf16 %v757, %v757
    %v760 = vld [vmem:[#allocation7] sm:$0xff]
    %v761 = vld [vmem:[#allocation7 + $0x8] sm:$0xff]
    %v762 = vld [vmem:[#allocation7 + $0x10] sm:$0xff]
    %v763 = vld [vmem:[#allocation7 + $0x18] sm:$0xff]
    %v764 = vld [vmem:[#allocation7 + $0x20] sm:$0xff]
    %v765 = vld [vmem:[#allocation7 + $0x28] sm:$0xff]
    %v766 = vld [vmem:[#allocation7 + $0x30] sm:$0xff]
    %v767 = vld [vmem:[#allocation7 + $0x38] sm:$0xff]
    %v768 = vld [vmem:[#allocation7 + $0x40] sm:$0xff]
    %v769 = vld [vmem:[#allocation7 + $0x48] sm:$0xff]
    %v770 = vld [vmem:[#allocation7 + $0x50] sm:$0xff]
    %v771 = vld [vmem:[#allocation7 + $0x58] sm:$0xff]
    %v772 = vld [vmem:[#allocation7 + $0x60] sm:$0xff]
    %v773 = vld [vmem:[#allocation7 + $0x68] sm:$0xff]
    %v774 = vld [vmem:[#allocation7 + $0x70] sm:$0xff]
    %v775 = vld [vmem:[#allocation7 + $0x78] sm:$0xff]
    %v776 = vld [vmem:[#allocation7 + $0x80] sm:$0xff]
    %v777 = vld [vmem:[#allocation7 + $0x88] sm:$0xff]
    %v778 = vld [vmem:[#allocation7 + $0x90] sm:$0xff]
    %v779 = vld [vmem:[#allocation7 + $0x98] sm:$0xff]
    %v780 = vld [vmem:[#allocation7 + $0xa0] sm:$0xff]
    %v781 = vld [vmem:[#allocation7 + $0xa8] sm:$0xff]
    %v782 = vld [vmem:[#allocation7 + $0xb0] sm:$0xff]
    %v783 = vld [vmem:[#allocation7 + $0xb8] sm:$0xff]
    %v784 = vld [vmem:[#allocation7 + $0xc0] sm:$0xff]
    %v785 = vld [vmem:[#allocation7 + $0xc8] sm:$0xff]
    %v786 = vld [vmem:[#allocation7 + $0xd0] sm:$0xff]
    %v787 = vld [vmem:[#allocation7 + $0xd8] sm:$0xff]
    %v788 = vld [vmem:[#allocation7 + $0xe0] sm:$0xff]
    %v789 = vld [vmem:[#allocation7 + $0xe8] sm:$0xff]
    %v790 = vld [vmem:[#allocation7 + $0xf0] sm:$0xff]
    %v791 = vld [vmem:[#allocation7 + $0xf8] sm:$0xff]
    %v792 = vlaneseq
    %v793 = vshrl.u32 %v792, 7
    %v794 = vsub.s32 3, %v793
    %v795 = vrot.slane %v115, %v794
    %v796 = vlaneseq
    %v797 = vshrl.u32 %v796, 7
    %v798 = vsub.s32 3, %v797
    %v799 = vrot.slane %v116, %v798
    %v832 = vunpack.c.l.b16 %v760
    %v833 = vunpack.c.h.b16 %v760
    %v834 = vunpack.c.l.b16 %v761
    %v835 = vunpack.c.h.b16 %v761
    %v836 = vunpack.c.l.b16 %v762
    %v837 = vunpack.c.h.b16 %v762
    %v838 = vunpack.c.l.b16 %v763
    %v839 = vunpack.c.h.b16 %v763
    %v840 = vunpack.c.l.b16 %v764
    %v841 = vunpack.c.h.b16 %v764
    %v842 = vunpack.c.l.b16 %v765
    %v843 = vunpack.c.h.b16 %v765
    %v844 = vunpack.c.l.b16 %v766
    %v845 = vunpack.c.h.b16 %v766
    %v846 = vunpack.c.l.b16 %v767
    %v847 = vunpack.c.h.b16 %v767
    %v848 = vunpack.c.l.b16 %v768
    %v849 = vunpack.c.h.b16 %v768
    %v850 = vunpack.c.l.b16 %v769
    %v851 = vunpack.c.h.b16 %v769
    %v852 = vunpack.c.l.b16 %v770
    %v853 = vunpack.c.h.b16 %v770
    %v854 = vunpack.c.l.b16 %v771
    %v855 = vunpack.c.h.b16 %v771
    %v856 = vunpack.c.l.b16 %v772
    %v857 = vunpack.c.h.b16 %v772
    %v858 = vunpack.c.l.b16 %v773
    %v859 = vunpack.c.h.b16 %v773
    %v860 = vunpack.c.l.b16 %v774
    %v861 = vunpack.c.h.b16 %v774
    %v862 = vunpack.c.l.b16 %v775
    %v863 = vunpack.c.h.b16 %v775
    %v864 = vunpack.c.l.b16 %v776
    %v865 = vunpack.c.h.b16 %v776
    %v866 = vunpack.c.l.b16 %v777
    %v867 = vunpack.c.h.b16 %v777
    %v868 = vunpack.c.l.b16 %v778
    %v869 = vunpack.c.h.b16 %v778
    %v870 = vunpack.c.l.b16 %v779
    %v871 = vunpack.c.h.b16 %v779
    %v872 = vunpack.c.l.b16 %v780
    %v873 = vunpack.c.h.b16 %v780
    %v874 = vunpack.c.l.b16 %v781
    %v875 = vunpack.c.h.b16 %v781
    %v876 = vunpack.c.l.b16 %v782
    %v877 = vunpack.c.h.b16 %v782
    %v878 = vunpack.c.l.b16 %v783
    %v879 = vunpack.c.h.b16 %v783
    %v880 = vunpack.c.l.b16 %v784
    %v881 = vunpack.c.h.b16 %v784
    %v882 = vunpack.c.l.b16 %v785
    %v883 = vunpack.c.h.b16 %v785
    %v884 = vunpack.c.l.b16 %v786
    %v885 = vunpack.c.h.b16 %v786
    %v886 = vunpack.c.l.b16 %v787
    %v887 = vunpack.c.h.b16 %v787
    %v888 = vunpack.c.l.b16 %v788
    %v889 = vunpack.c.h.b16 %v788
    %v890 = vunpack.c.l.b16 %v789
    %v891 = vunpack.c.h.b16 %v789
    %v892 = vunpack.c.l.b16 %v790
    %v893 = vunpack.c.h.b16 %v790
    %v894 = vunpack.c.l.b16 %v791
    %v895 = vunpack.c.h.b16 %v791
    %v896 = vpack.c.b16 %v834, %v832
    %v897 = vpack.c.b16 %v835, %v833
    %v898 = vpack.c.b16 %v838, %v836
    %v899 = vpack.c.b16 %v839, %v837
    %v900 = vpack.c.b16 %v842, %v840
    %v901 = vpack.c.b16 %v843, %v841
    %v902 = vpack.c.b16 %v846, %v844
    %v903 = vpack.c.b16 %v847, %v845
    %v904 = vpack.c.b16 %v850, %v848
    %v905 = vpack.c.b16 %v851, %v849
    %v906 = vpack.c.b16 %v854, %v852
    %v907 = vpack.c.b16 %v855, %v853
    %v908 = vpack.c.b16 %v858, %v856
    %v909 = vpack.c.b16 %v859, %v857
    %v910 = vpack.c.b16 %v862, %v860
    %v911 = vpack.c.b16 %v863, %v861
    %v912 = vpack.c.b16 %v866, %v864
    %v913 = vpack.c.b16 %v867, %v865
    %v914 = vpack.c.b16 %v870, %v868
    %v915 = vpack.c.b16 %v871, %v869
    %v916 = vpack.c.b16 %v874, %v872
    %v917 = vpack.c.b16 %v875, %v873
    %v918 = vpack.c.b16 %v878, %v876
    %v919 = vpack.c.b16 %v879, %v877
    %v920 = vpack.c.b16 %v882, %v880
    %v921 = vpack.c.b16 %v883, %v881
    %v922 = vpack.c.b16 %v886, %v884
    %v923 = vpack.c.b16 %v887, %v885
    %v924 = vpack.c.b16 %v890, %v888
    %v925 = vpack.c.b16 %v891, %v889
    %v926 = vpack.c.b16 %v894, %v892
    %v927 = vpack.c.b16 %v895, %v893
    %960 = vmatprep.subr.bf16.mxu0 %v911
    %961 = vmatpush1.bf16.msra.mxu0 %v910
    %962 = vmatprep.subr.bf16.mxu0 %v909
    %963 = vmatpush1.bf16.msra.mxu0 %v908
    %964 = vmatprep.subr.bf16.mxu0 %v907
    %965 = vmatpush1.bf16.msra.mxu0 %v906
    %966 = vmatprep.subr.bf16.mxu0 %v905
    %967 = vmatpush1.bf16.msra.mxu0 %v904
    %968 = vmatprep.subr.bf16.mxu0 %v903
    %969 = vmatpush1.bf16.msra.mxu0 %v902
    %970 = vmatprep.subr.bf16.mxu0 %v901
    %971 = vmatpush1.bf16.msra.mxu0 %v900
    %972 = vmatprep.subr.bf16.mxu0 %v899
    %973 = vmatpush1.bf16.msra.mxu0 %v898
    %974 = vmatprep.subr.bf16.mxu0 %v897
    %975 = vmatpush1.bf16.msra.mxu0 %v896
    %976 = vmatprep.subr.bf16.mxu0 %v927
    %977 = vmatpush2.bf16.msra.mxu0 %v926
    %978 = vmatprep.subr.bf16.mxu0 %v925
    %979 = vmatpush2.bf16.msra.mxu0 %v924
    %980 = vmatprep.subr.bf16.mxu0 %v923
    %981 = vmatpush2.bf16.msra.mxu0 %v922
    %982 = vmatprep.subr.bf16.mxu0 %v921
    %983 = vmatpush2.bf16.msra.mxu0 %v920
    %984 = vmatprep.subr.bf16.mxu0 %v919
    %985 = vmatpush2.bf16.msra.mxu0 %v918
    %986 = vmatprep.subr.bf16.mxu0 %v917
    %987 = vmatpush2.bf16.msra.mxu0 %v916
    %988 = vmatprep.subr.bf16.mxu0 %v915
    %989 = vmatpush2.bf16.msra.mxu0 %v914
    %990 = vmatprep.subr.bf16.mxu0 %v913
    %991 = vmatpush2.bf16.msra.mxu0 %v912
    %992 = vmatprep.mubr.bf16.mxu0 %v759
    %993 = vmatmul.mubr.bf16.gmra.mxu0 %v758
    %v994 = vpop.f32.mrf.mxu0
    %v995 = vadd.f32 %v795, %v994
    %v996 = vpop.f32.mrf.mxu0
    %v997 = vadd.f32 %v799, %v996
    %v998 = vpop.f32.mrf.mxu0
    %v999 = vpop.f32.mrf.mxu0
    %1000 = vdwg.mxu0
    %v1001 = vmax.f32 %v995, 0.0
    %v1002 = vmax.f32 %v997, 0.0
    %v1003 = vpack.c.bf16 %v1001, %v1001
    %v1004 = vpack.c.bf16 %v1002, %v1002
    %v1005 = vld [vmem:[#allocation9] sm:$0xff]
    %v1006 = vld [vmem:[#allocation9 + $0x8] sm:$0xff]
    %v1007 = vld [vmem:[#allocation9 + $0x10] sm:$0xff]
    %v1008 = vld [vmem:[#allocation9 + $0x18] sm:$0xff]
    %v1009 = vld [vmem:[#allocation9 + $0x20] sm:$0xff]
    %v1010 = vld [vmem:[#allocation9 + $0x28] sm:$0xff]
    %v1011 = vld [vmem:[#allocation9 + $0x30] sm:$0xff]
    %v1012 = vld [vmem:[#allocation9 + $0x38] sm:$0xff]
    %v1013 = vld [vmem:[#allocation9 + $0x40] sm:$0xff]
    %v1014 = vld [vmem:[#allocation9 + $0x48] sm:$0xff]
    %v1015 = vld [vmem:[#allocation9 + $0x50] sm:$0xff]
    %v1016 = vld [vmem:[#allocation9 + $0x58] sm:$0xff]
    %v1017 = vld [vmem:[#allocation9 + $0x60] sm:$0xff]
    %v1018 = vld [vmem:[#allocation9 + $0x68] sm:$0xff]
    %v1019 = vld [vmem:[#allocation9 + $0x70] sm:$0xff]
    %v1020 = vld [vmem:[#allocation9 + $0x78] sm:$0xff]
    %v1021 = vld [vmem:[#allocation9 + $0x80] sm:$0xff]
    %v1022 = vld [vmem:[#allocation9 + $0x88] sm:$0xff]
    %v1023 = vld [vmem:[#allocation9 + $0x90] sm:$0xff]
    %v1024 = vld [vmem:[#allocation9 + $0x98] sm:$0xff]
    %v1025 = vld [vmem:[#allocation9 + $0xa0] sm:$0xff]
    %v1026 = vld [vmem:[#allocation9 + $0xa8] sm:$0xff]
    %v1027 = vld [vmem:[#allocation9 + $0xb0] sm:$0xff]
    %v1028 = vld [vmem:[#allocation9 + $0xb8] sm:$0xff]
    %v1029 = vld [vmem:[#allocation9 + $0xc0] sm:$0xff]
    %v1030 = vld [vmem:[#allocation9 + $0xc8] sm:$0xff]
    %v1031 = vld [vmem:[#allocation9 + $0xd0] sm:$0xff]
    %v1032 = vld [vmem:[#allocation9 + $0xd8] sm:$0xff]
    %v1033 = vld [vmem:[#allocation9 + $0xe0] sm:$0xff]
    %v1034 = vld [vmem:[#allocation9 + $0xe8] sm:$0xff]
    %v1035 = vld [vmem:[#allocation9 + $0xf0] sm:$0xff]
    %v1036 = vld [vmem:[#allocation9 + $0xf8] sm:$0xff]
    %v1037 = vlaneseq
    %v1038 = vshrl.u32 %v1037, 7
    %v1039 = vsub.s32 4, %v1038
    %v1040 = vrot.slane %v115, %v1039
    %v1041 = vlaneseq
    %v1042 = vshrl.u32 %v1041, 7
    %v1043 = vsub.s32 4, %v1042
    %v1044 = vrot.slane %v116, %v1043
    %v1077 = vunpack.c.l.b16 %v1005
    %v1078 = vunpack.c.h.b16 %v1005
    %v1079 = vunpack.c.l.b16 %v1006
    %v1080 = vunpack.c.h.b16 %v1006
    %v1081 = vunpack.c.l.b16 %v1007
    %v1082 = vunpack.c.h.b16 %v1007
    %v1083 = vunpack.c.l.b16 %v1008
    %v1084 = vunpack.c.h.b16 %v1008
    %v1085 = vunpack.c.l.b16 %v1009
    %v1086 = vunpack.c.h.b16 %v1009
    %v1087 = vunpack.c.l.b16 %v1010
    %v1088 = vunpack.c.h.b16 %v1010
    %v1089 = vunpack.c.l.b16 %v1011
    %v1090 = vunpack.c.h.b16 %v1011
    %v1091 = vunpack.c.l.b16 %v1012
    %v1092 = vunpack.c.h.b16 %v1012
    %v1093 = vunpack.c.l.b16 %v1013
    %v1094 = vunpack.c.h.b16 %v1013
    %v1095 = vunpack.c.l.b16 %v1014
    %v1096 = vunpack.c.h.b16 %v1014
    %v1097 = vunpack.c.l.b16 %v1015
    %v1098 = vunpack.c.h.b16 %v1015
    %v1099 = vunpack.c.l.b16 %v1016
    %v1100 = vunpack.c.h.b16 %v1016
    %v1101 = vunpack.c.l.b16 %v1017
    %v1102 = vunpack.c.h.b16 %v1017
    %v1103 = vunpack.c.l.b16 %v1018
    %v1104 = vunpack.c.h.b16 %v1018
    %v1105 = vunpack.c.l.b16 %v1019
    %v1106 = vunpack.c.h.b16 %v1019
    %v1107 = vunpack.c.l.b16 %v1020
    %v1108 = vunpack.c.h.b16 %v1020
    %v1109 = vunpack.c.l.b16 %v1021
    %v1110 = vunpack.c.h.b16 %v1021
    %v1111 = vunpack.c.l.b16 %v1022
    %v1112 = vunpack.c.h.b16 %v1022
    %v1113 = vunpack.c.l.b16 %v1023
    %v1114 = vunpack.c.h.b16 %v1023
    %v1115 = vunpack.c.l.b16 %v1024
    %v1116 = vunpack.c.h.b16 %v1024
    %v1117 = vunpack.c.l.b16 %v1025
    %v1118 = vunpack.c.h.b16 %v1025
    %v1119 = vunpack.c.l.b16 %v1026
    %v1120 = vunpack.c.h.b16 %v1026
    %v1121 = vunpack.c.l.b16 %v1027
    %v1122 = vunpack.c.h.b16 %v1027
    %v1123 = vunpack.c.l.b16 %v1028
    %v1124 = vunpack.c.h.b16 %v1028
    %v1125 = vunpack.c.l.b16 %v1029
    %v1126 = vunpack.c.h.b16 %v1029
    %v1127 = vunpack.c.l.b16 %v1030
    %v1128 = vunpack.c.h.b16 %v1030
    %v1129 = vunpack.c.l.b16 %v1031
    %v1130 = vunpack.c.h.b16 %v1031
    %v1131 = vunpack.c.l.b16 %v1032
    %v1132 = vunpack.c.h.b16 %v1032
    %v1133 = vunpack.c.l.b16 %v1033
    %v1134 = vunpack.c.h.b16 %v1033
    %v1135 = vunpack.c.l.b16 %v1034
    %v1136 = vunpack.c.h.b16 %v1034
    %v1137 = vunpack.c.l.b16 %v1035
    %v1138 = vunpack.c.h.b16 %v1035
    %v1139 = vunpack.c.l.b16 %v1036
    %v1140 = vunpack.c.h.b16 %v1036
    %v1141 = vpack.c.b16 %v1079, %v1077
    %v1142 = vpack.c.b16 %v1080, %v1078
    %v1143 = vpack.c.b16 %v1083, %v1081
    %v1144 = vpack.c.b16 %v1084, %v1082
    %v1145 = vpack.c.b16 %v1087, %v1085
    %v1146 = vpack.c.b16 %v1088, %v1086
    %v1147 = vpack.c.b16 %v1091, %v1089
    %v1148 = vpack.c.b16 %v1092, %v1090
    %v1149 = vpack.c.b16 %v1095, %v1093
    %v1150 = vpack.c.b16 %v1096, %v1094
    %v1151 = vpack.c.b16 %v1099, %v1097
    %v1152 = vpack.c.b16 %v1100, %v1098
    %v1153 = vpack.c.b16 %v1103, %v1101
    %v1154 = vpack.c.b16 %v1104, %v1102
    %v1155 = vpack.c.b16 %v1107, %v1105
    %v1156 = vpack.c.b16 %v1108, %v1106
    %v1157 = vpack.c.b16 %v1111, %v1109
    %v1158 = vpack.c.b16 %v1112, %v1110
    %v1159 = vpack.c.b16 %v1115, %v1113
    %v1160 = vpack.c.b16 %v1116, %v1114
    %v1161 = vpack.c.b16 %v1119, %v1117
    %v1162 = vpack.c.b16 %v1120, %v1118
    %v1163 = vpack.c.b16 %v1123, %v1121
    %v1164 = vpack.c.b16 %v1124, %v1122
    %v1165 = vpack.c.b16 %v1127, %v1125
    %v1166 = vpack.c.b16 %v1128, %v1126
    %v1167 = vpack.c.b16 %v1131, %v1129
    %v1168 = vpack.c.b16 %v1132, %v1130
    %v1169 = vpack.c.b16 %v1135, %v1133
    %v1170 = vpack.c.b16 %v1136, %v1134
    %v1171 = vpack.c.b16 %v1139, %v1137
    %v1172 = vpack.c.b16 %v1140, %v1138
    %1205 = vmatprep.subr.bf16.mxu0 %v1156
    %1206 = vmatpush1.bf16.msra.mxu0 %v1155
    %1207 = vmatprep.subr.bf16.mxu0 %v1154
    %1208 = vmatpush1.bf16.msra.mxu0 %v1153
    %1209 = vmatprep.subr.bf16.mxu0 %v1152
    %1210 = vmatpush1.bf16.msra.mxu0 %v1151
    %1211 = vmatprep.subr.bf16.mxu0 %v1150
    %1212 = vmatpush1.bf16.msra.mxu0 %v1149
    %1213 = vmatprep.subr.bf16.mxu0 %v1148
    %1214 = vmatpush1.bf16.msra.mxu0 %v1147
    %1215 = vmatprep.subr.bf16.mxu0 %v1146
    %1216 = vmatpush1.bf16.msra.mxu0 %v1145
    %1217 = vmatprep.subr.bf16.mxu0 %v1144
    %1218 = vmatpush1.bf16.msra.mxu0 %v1143
    %1219 = vmatprep.subr.bf16.mxu0 %v1142
    %1220 = vmatpush1.bf16.msra.mxu0 %v1141
    %1221 = vmatprep.subr.bf16.mxu0 %v1172
    %1222 = vmatpush2.bf16.msra.mxu0 %v1171
    %1223 = vmatprep.subr.bf16.mxu0 %v1170
    %1224 = vmatpush2.bf16.msra.mxu0 %v1169
    %1225 = vmatprep.subr.bf16.mxu0 %v1168
    %1226 = vmatpush2.bf16.msra.mxu0 %v1167
    %1227 = vmatprep.subr.bf16.mxu0 %v1166
    %1228 = vmatpush2.bf16.msra.mxu0 %v1165
    %1229 = vmatprep.subr.bf16.mxu0 %v1164
    %1230 = vmatpush2.bf16.msra.mxu0 %v1163
    %1231 = vmatprep.subr.bf16.mxu0 %v1162
    %1232 = vmatpush2.bf16.msra.mxu0 %v1161
    %1233 = vmatprep.subr.bf16.mxu0 %v1160
    %1234 = vmatpush2.bf16.msra.mxu0 %v1159
    %1235 = vmatprep.subr.bf16.mxu0 %v1158
    %1236 = vmatpush2.bf16.msra.mxu0 %v1157
    %1237 = vmatprep.mubr.bf16.mxu0 %v1004
    %1238 = vmatmul.mubr.bf16.gmra.mxu0 %v1003
    %v1239 = vpop.f32.mrf.mxu0
    %v1240 = vadd.f32 %v1040, %v1239
    %v1241 = vpop.f32.mrf.mxu0
    %v1242 = vadd.f32 %v1044, %v1241
    %v1243 = vpop.f32.mrf.mxu0
    %v1244 = vpop.f32.mrf.mxu0
    %1245 = vdwg.mxu0
    %v1246 = vmax.f32 %v1240, 0.0
    %v1247 = vmax.f32 %v1242, 0.0
    %v1248 = vadd.f32 %v756, %v1246
    %v1249 = vadd.f32 %v757, %v1247
    %v1250 = vpack.c.bf16 %v1248, %v1248
    %v1251 = vpack.c.bf16 %v1249, %v1249
    %v1252 = vld [vmem:[#allocation10] sm:$0xff]
    %v1253 = vld [vmem:[#allocation10 + $0x8] sm:$0xff]
    %v1254 = vld [vmem:[#allocation10 + $0x10] sm:$0xff]
    %v1255 = vld [vmem:[#allocation10 + $0x18] sm:$0xff]
    %v1256 = vld [vmem:[#allocation10 + $0x20] sm:$0xff]
    %v1257 = vld [vmem:[#allocation10 + $0x28] sm:$0xff]
    %v1258 = vld [vmem:[#allocation10 + $0x30] sm:$0xff]
    %v1259 = vld [vmem:[#allocation10 + $0x38] sm:$0xff]
    %v1260 = vld [vmem:[#allocation10 + $0x40] sm:$0xff]
    %v1261 = vld [vmem:[#allocation10 + $0x48] sm:$0xff]
    %v1262 = vld [vmem:[#allocation10 + $0x50] sm:$0xff]
    %v1263 = vld [vmem:[#allocation10 + $0x58] sm:$0xff]
    %v1264 = vld [vmem:[#allocation10 + $0x60] sm:$0xff]
    %v1265 = vld [vmem:[#allocation10 + $0x68] sm:$0xff]
    %v1266 = vld [vmem:[#allocation10 + $0x70] sm:$0xff]
    %v1267 = vld [vmem:[#allocation10 + $0x78] sm:$0xff]
    %v1268 = vld [vmem:[#allocation10 + $0x80] sm:$0xff]
    %v1269 = vld [vmem:[#allocation10 + $0x88] sm:$0xff]
    %v1270 = vld [vmem:[#allocation10 + $0x90] sm:$0xff]
    %v1271 = vld [vmem:[#allocation10 + $0x98] sm:$0xff]
    %v1272 = vld [vmem:[#allocation10 + $0xa0] sm:$0xff]
    %v1273 = vld [vmem:[#allocation10 + $0xa8] sm:$0xff]
    %v1274 = vld [vmem:[#allocation10 + $0xb0] sm:$0xff]
    %v1275 = vld [vmem:[#allocation10 + $0xb8] sm:$0xff]
    %v1276 = vld [vmem:[#allocation10 + $0xc0] sm:$0xff]
    %v1277 = vld [vmem:[#allocation10 + $0xc8] sm:$0xff]
    %v1278 = vld [vmem:[#allocation10 + $0xd0] sm:$0xff]
    %v1279 = vld [vmem:[#allocation10 + $0xd8] sm:$0xff]
    %v1280 = vld [vmem:[#allocation10 + $0xe0] sm:$0xff]
    %v1281 = vld [vmem:[#allocation10 + $0xe8] sm:$0xff]
    %v1282 = vld [vmem:[#allocation10 + $0xf0] sm:$0xff]
    %v1283 = vld [vmem:[#allocation10 + $0xf8] sm:$0xff]
    %v1284 = vld [vmem:[#allocation10 + $0x100] sm:$0xff]
    %v1285 = vld [vmem:[#allocation10 + $0x108] sm:$0xff]
    %v1286 = vld [vmem:[#allocation10 + $0x110] sm:$0xff]
    %v1287 = vld [vmem:[#allocation10 + $0x118] sm:$0xff]
    %v1288 = vld [vmem:[#allocation10 + $0x120] sm:$0xff]
    %v1289 = vld [vmem:[#allocation10 + $0x128] sm:$0xff]
    %v1290 = vld [vmem:[#allocation10 + $0x130] sm:$0xff]
    %v1291 = vld [vmem:[#allocation10 + $0x138] sm:$0xff]
    %v1292 = vld [vmem:[#allocation10 + $0x140] sm:$0xff]
    %v1293 = vld [vmem:[#allocation10 + $0x148] sm:$0xff]
    %v1294 = vld [vmem:[#allocation10 + $0x150] sm:$0xff]
    %v1295 = vld [vmem:[#allocation10 + $0x158] sm:$0xff]
    %v1296 = vld [vmem:[#allocation10 + $0x160] sm:$0xff]
    %v1297 = vld [vmem:[#allocation10 + $0x168] sm:$0xff]
    %v1298 = vld [vmem:[#allocation10 + $0x170] sm:$0xff]
    %v1299 = vld [vmem:[#allocation10 + $0x178] sm:$0xff]
    %v1300 = vld [vmem:[#allocation10 + $0x180] sm:$0xff]
    %v1301 = vld [vmem:[#allocation10 + $0x188] sm:$0xff]
    %v1302 = vld [vmem:[#allocation10 + $0x190] sm:$0xff]
    %v1303 = vld [vmem:[#allocation10 + $0x198] sm:$0xff]
    %v1304 = vld [vmem:[#allocation10 + $0x1a0] sm:$0xff]
    %v1305 = vld [vmem:[#allocation10 + $0x1a8] sm:$0xff]
    %v1306 = vld [vmem:[#allocation10 + $0x1b0] sm:$0xff]
    %v1307 = vld [vmem:[#allocation10 + $0x1b8] sm:$0xff]
    %v1308 = vld [vmem:[#allocation10 + $0x1c0] sm:$0xff]
    %v1309 = vld [vmem:[#allocation10 + $0x1c8] sm:$0xff]
    %v1310 = vld [vmem:[#allocation10 + $0x1d0] sm:$0xff]
    %v1311 = vld [vmem:[#allocation10 + $0x1d8] sm:$0xff]
    %v1312 = vld [vmem:[#allocation10 + $0x1e0] sm:$0xff]
    %v1313 = vld [vmem:[#allocation10 + $0x1e8] sm:$0xff]
    %v1314 = vld [vmem:[#allocation10 + $0x1f0] sm:$0xff]
    %v1315 = vld [vmem:[#allocation10 + $0x1f8] sm:$0xff]
    %v1316 = vld [vmem:[#allocation10 + $0x200] sm:$0xff]
    %v1317 = vld [vmem:[#allocation10 + $0x208] sm:$0xff]
    %v1318 = vld [vmem:[#allocation10 + $0x210] sm:$0xff]
    %v1319 = vld [vmem:[#allocation10 + $0x218] sm:$0xff]
    %v1320 = vld [vmem:[#allocation10 + $0x220] sm:$0xff]
    %v1321 = vld [vmem:[#allocation10 + $0x228] sm:$0xff]
    %v1322 = vld [vmem:[#allocation10 + $0x230] sm:$0xff]
    %v1323 = vld [vmem:[#allocation10 + $0x238] sm:$0xff]
    %v1324 = vld [vmem:[#allocation10 + $0x240] sm:$0xff]
    %v1325 = vld [vmem:[#allocation10 + $0x248] sm:$0xff]
    %v1326 = vld [vmem:[#allocation10 + $0x250] sm:$0xff]
    %v1327 = vld [vmem:[#allocation10 + $0x258] sm:$0xff]
    %v1328 = vld [vmem:[#allocation10 + $0x260] sm:$0xff]
    %v1329 = vld [vmem:[#allocation10 + $0x268] sm:$0xff]
    %v1330 = vld [vmem:[#allocation10 + $0x270] sm:$0xff]
    %v1331 = vld [vmem:[#allocation10 + $0x278] sm:$0xff]
    %v1332 = vld [vmem:[#allocation10 + $0x280] sm:$0xff]
    %v1333 = vld [vmem:[#allocation10 + $0x288] sm:$0xff]
    %v1334 = vld [vmem:[#allocation10 + $0x290] sm:$0xff]
    %v1335 = vld [vmem:[#allocation10 + $0x298] sm:$0xff]
    %v1336 = vld [vmem:[#allocation10 + $0x2a0] sm:$0xff]
    %v1337 = vld [vmem:[#allocation10 + $0x2a8] sm:$0xff]
    %v1338 = vld [vmem:[#allocation10 + $0x2b0] sm:$0xff]
    %v1339 = vld [vmem:[#allocation10 + $0x2b8] sm:$0xff]
    %v1340 = vld [vmem:[#allocation10 + $0x2c0] sm:$0xff]
    %v1341 = vld [vmem:[#allocation10 + $0x2c8] sm:$0xff]
    %v1342 = vld [vmem:[#allocation10 + $0x2d0] sm:$0xff]
    %v1343 = vld [vmem:[#allocation10 + $0x2d8] sm:$0xff]
    %v1344 = vld [vmem:[#allocation10 + $0x2e0] sm:$0xff]
    %v1345 = vld [vmem:[#allocation10 + $0x2e8] sm:$0xff]
    %v1346 = vld [vmem:[#allocation10 + $0x2f0] sm:$0xff]
    %v1347 = vld [vmem:[#allocation10 + $0x2f8] sm:$0xff]
    %v1348 = vld [vmem:[#allocation10 + $0x300] sm:$0xff]
    %v1349 = vld [vmem:[#allocation10 + $0x308] sm:$0xff]
    %v1350 = vld [vmem:[#allocation10 + $0x310] sm:$0xff]
    %v1351 = vld [vmem:[#allocation10 + $0x318] sm:$0xff]
    %v1352 = vld [vmem:[#allocation10 + $0x320] sm:$0xff]
    %v1353 = vld [vmem:[#allocation10 + $0x328] sm:$0xff]
    %v1354 = vld [vmem:[#allocation10 + $0x330] sm:$0xff]
    %v1355 = vld [vmem:[#allocation10 + $0x338] sm:$0xff]
    %v1356 = vld [vmem:[#allocation10 + $0x340] sm:$0xff]
    %v1357 = vld [vmem:[#allocation10 + $0x348] sm:$0xff]
    %v1358 = vld [vmem:[#allocation10 + $0x350] sm:$0xff]
    %v1359 = vld [vmem:[#allocation10 + $0x358] sm:$0xff]
    %v1360 = vld [vmem:[#allocation10 + $0x360] sm:$0xff]
    %v1361 = vld [vmem:[#allocation10 + $0x368] sm:$0xff]
    %v1362 = vld [vmem:[#allocation10 + $0x370] sm:$0xff]
    %v1363 = vld [vmem:[#allocation10 + $0x378] sm:$0xff]
    %v1364 = vld [vmem:[#allocation10 + $0x380] sm:$0xff]
    %v1365 = vld [vmem:[#allocation10 + $0x388] sm:$0xff]
    %v1366 = vld [vmem:[#allocation10 + $0x390] sm:$0xff]
    %v1367 = vld [vmem:[#allocation10 + $0x398] sm:$0xff]
    %v1368 = vld [vmem:[#allocation10 + $0x3a0] sm:$0xff]
    %v1369 = vld [vmem:[#allocation10 + $0x3a8] sm:$0xff]
    %v1370 = vld [vmem:[#allocation10 + $0x3b0] sm:$0xff]
    %v1371 = vld [vmem:[#allocation10 + $0x3b8] sm:$0xff]
    %v1372 = vld [vmem:[#allocation10 + $0x3c0] sm:$0xff]
    %v1373 = vld [vmem:[#allocation10 + $0x3c8] sm:$0xff]
    %v1374 = vld [vmem:[#allocation10 + $0x3d0] sm:$0xff]
    %v1375 = vld [vmem:[#allocation10 + $0x3d8] sm:$0xff]
    %v1376 = vld [vmem:[#allocation10 + $0x3e0] sm:$0xff]
    %v1377 = vld [vmem:[#allocation10 + $0x3e8] sm:$0xff]
    %v1378 = vld [vmem:[#allocation10 + $0x3f0] sm:$0xff]
    %v1379 = vld [vmem:[#allocation10 + $0x3f8] sm:$0xff]
    %v1381 = vlaneseq
    %v1382 = vshrl.u32 %v1381, 7
    %v1383 = vsub.s32 0, %v1382
    %v1384 = vrot.slane %v117, %v1383
    %v1385 = vlaneseq
    %v1386 = vshrl.u32 %v1385, 7
    %v1387 = vsub.s32 1, %v1386
    %v1388 = vrot.slane %v117, %v1387
    %v1389 = vlaneseq
    %v1390 = vshrl.u32 %v1389, 7
    %v1391 = vsub.s32 2, %v1390
    %v1392 = vrot.slane %v117, %v1391
    %v1393 = vlaneseq
    %v1394 = vshrl.u32 %v1393, 7
    %v1395 = vsub.s32 3, %v1394
    %v1396 = vrot.slane %v117, %v1395
    %v1397 = vlaneseq
    %v1398 = vshrl.u32 %v1397, 7
    %v1399 = vsub.s32 4, %v1398
    %v1400 = vrot.slane %v117, %v1399
    %v1401 = vlaneseq
    %v1402 = vshrl.u32 %v1401, 7
    %v1403 = vsub.s32 5, %v1402
    %v1404 = vrot.slane %v117, %v1403
    %v1405 = vlaneseq
    %v1406 = vshrl.u32 %v1405, 7
    %v1407 = vsub.s32 6, %v1406
    %v1408 = vrot.slane %v117, %v1407
    %v1409 = vlaneseq
    %v1410 = vshrl.u32 %v1409, 7
    %v1411 = vsub.s32 7, %v1410
    %v1412 = vrot.slane %v117, %v1411
    %v1549 = vunpack.c.l.b16 %v1252
    %v1550 = vunpack.c.h.b16 %v1252
    %v1551 = vunpack.c.l.b16 %v1253
    %v1552 = vunpack.c.h.b16 %v1253
    %v1553 = vunpack.c.l.b16 %v1254
    %v1554 = vunpack.c.h.b16 %v1254
    %v1555 = vunpack.c.l.b16 %v1255
    %v1556 = vunpack.c.h.b16 %v1255
    %v1557 = vunpack.c.l.b16 %v1256
    %v1558 = vunpack.c.h.b16 %v1256
    %v1559 = vunpack.c.l.b16 %v1257
    %v1560 = vunpack.c.h.b16 %v1257
    %v1561 = vunpack.c.l.b16 %v1258
    %v1562 = vunpack.c.h.b16 %v1258
    %v1563 = vunpack.c.l.b16 %v1259
    %v1564 = vunpack.c.h.b16 %v1259
    %v1565 = vunpack.c.l.b16 %v1260
    %v1566 = vunpack.c.h.b16 %v1260
    %v1567 = vunpack.c.l.b16 %v1261
    %v1568 = vunpack.c.h.b16 %v1261
    %v1569 = vunpack.c.l.b16 %v1262
    %v1570 = vunpack.c.h.b16 %v1262
    %v1571 = vunpack.c.l.b16 %v1263
    %v1572 = vunpack.c.h.b16 %v1263
    %v1573 = vunpack.c.l.b16 %v1264
    %v1574 = vunpack.c.h.b16 %v1264
    %v1575 = vunpack.c.l.b16 %v1265
    %v1576 = vunpack.c.h.b16 %v1265
    %v1577 = vunpack.c.l.b16 %v1266
    %v1578 = vunpack.c.h.b16 %v1266
    %v1579 = vunpack.c.l.b16 %v1267
    %v1580 = vunpack.c.h.b16 %v1267
    %v1581 = vunpack.c.l.b16 %v1268
    %v1582 = vunpack.c.h.b16 %v1268
    %v1583 = vunpack.c.l.b16 %v1269
    %v1584 = vunpack.c.h.b16 %v1269
    %v1585 = vunpack.c.l.b16 %v1270
    %v1586 = vunpack.c.h.b16 %v1270
    %v1587 = vunpack.c.l.b16 %v1271
    %v1588 = vunpack.c.h.b16 %v1271
    %v1589 = vunpack.c.l.b16 %v1272
    %v1590 = vunpack.c.h.b16 %v1272
    %v1591 = vunpack.c.l.b16 %v1273
    %v1592 = vunpack.c.h.b16 %v1273
    %v1593 = vunpack.c.l.b16 %v1274
    %v1594 = vunpack.c.h.b16 %v1274
    %v1595 = vunpack.c.l.b16 %v1275
    %v1596 = vunpack.c.h.b16 %v1275
    %v1597 = vunpack.c.l.b16 %v1276
    %v1598 = vunpack.c.h.b16 %v1276
    %v1599 = vunpack.c.l.b16 %v1277
    %v1600 = vunpack.c.h.b16 %v1277
    %v1601 = vunpack.c.l.b16 %v1278
    %v1602 = vunpack.c.h.b16 %v1278
    %v1603 = vunpack.c.l.b16 %v1279
    %v1604 = vunpack.c.h.b16 %v1279
    %v1605 = vunpack.c.l.b16 %v1280
    %v1606 = vunpack.c.h.b16 %v1280
    %v1607 = vunpack.c.l.b16 %v1281
    %v1608 = vunpack.c.h.b16 %v1281
    %v1609 = vunpack.c.l.b16 %v1282
    %v1610 = vunpack.c.h.b16 %v1282
    %v1611 = vunpack.c.l.b16 %v1283
    %v1612 = vunpack.c.h.b16 %v1283
    %v1613 = vunpack.c.l.b16 %v1284
    %v1614 = vunpack.c.h.b16 %v1284
    %v1615 = vunpack.c.l.b16 %v1285
    %v1616 = vunpack.c.h.b16 %v1285
    %v1617 = vunpack.c.l.b16 %v1286
    %v1618 = vunpack.c.h.b16 %v1286
    %v1619 = vunpack.c.l.b16 %v1287
    %v1620 = vunpack.c.h.b16 %v1287
    %v1621 = vunpack.c.l.b16 %v1288
    %v1622 = vunpack.c.h.b16 %v1288
    %v1623 = vunpack.c.l.b16 %v1289
    %v1624 = vunpack.c.h.b16 %v1289
    %v1625 = vunpack.c.l.b16 %v1290
    %v1626 = vunpack.c.h.b16 %v1290
    %v1627 = vunpack.c.l.b16 %v1291
    %v1628 = vunpack.c.h.b16 %v1291
    %v1629 = vunpack.c.l.b16 %v1292
    %v1630 = vunpack.c.h.b16 %v1292
    %v1631 = vunpack.c.l.b16 %v1293
    %v1632 = vunpack.c.h.b16 %v1293
    %v1633 = vunpack.c.l.b16 %v1294
    %v1634 = vunpack.c.h.b16 %v1294
    %v1635 = vunpack.c.l.b16 %v1295
    %v1636 = vunpack.c.h.b16 %v1295
    %v1637 = vunpack.c.l.b16 %v1296
    %v1638 = vunpack.c.h.b16 %v1296
    %v1639 = vunpack.c.l.b16 %v1297
    %v1640 = vunpack.c.h.b16 %v1297
    %v1641 = vunpack.c.l.b16 %v1298
    %v1642 = vunpack.c.h.b16 %v1298
    %v1643 = vunpack.c.l.b16 %v1299
    %v1644 = vunpack.c.h.b16 %v1299
    %v1645 = vunpack.c.l.b16 %v1300
    %v1646 = vunpack.c.h.b16 %v1300
    %v1647 = vunpack.c.l.b16 %v1301
    %v1648 = vunpack.c.h.b16 %v1301
    %v1649 = vunpack.c.l.b16 %v1302
    %v1650 = vunpack.c.h.b16 %v1302
    %v1651 = vunpack.c.l.b16 %v1303
    %v1652 = vunpack.c.h.b16 %v1303
    %v1653 = vunpack.c.l.b16 %v1304
    %v1654 = vunpack.c.h.b16 %v1304
    %v1655 = vunpack.c.l.b16 %v1305
    %v1656 = vunpack.c.h.b16 %v1305
    %v1657 = vunpack.c.l.b16 %v1306
    %v1658 = vunpack.c.h.b16 %v1306
    %v1659 = vunpack.c.l.b16 %v1307
    %v1660 = vunpack.c.h.b16 %v1307
    %v1661 = vunpack.c.l.b16 %v1308
    %v1662 = vunpack.c.h.b16 %v1308
    %v1663 = vunpack.c.l.b16 %v1309
    %v1664 = vunpack.c.h.b16 %v1309
    %v1665 = vunpack.c.l.b16 %v1310
    %v1666 = vunpack.c.h.b16 %v1310
    %v1667 = vunpack.c.l.b16 %v1311
    %v1668 = vunpack.c.h.b16 %v1311
    %v1669 = vunpack.c.l.b16 %v1312
    %v1670 = vunpack.c.h.b16 %v1312
    %v1671 = vunpack.c.l.b16 %v1313
    %v1672 = vunpack.c.h.b16 %v1313
    %v1673 = vunpack.c.l.b16 %v1314
    %v1674 = vunpack.c.h.b16 %v1314
    %v1675 = vunpack.c.l.b16 %v1315
    %v1676 = vunpack.c.h.b16 %v1315
    %v1677 = vunpack.c.l.b16 %v1316
    %v1678 = vunpack.c.h.b16 %v1316
    %v1679 = vunpack.c.l.b16 %v1317
    %v1680 = vunpack.c.h.b16 %v1317
    %v1681 = vunpack.c.l.b16 %v1318
    %v1682 = vunpack.c.h.b16 %v1318
    %v1683 = vunpack.c.l.b16 %v1319
    %v1684 = vunpack.c.h.b16 %v1319
    %v1685 = vunpack.c.l.b16 %v1320
    %v1686 = vunpack.c.h.b16 %v1320
    %v1687 = vunpack.c.l.b16 %v1321
    %v1688 = vunpack.c.h.b16 %v1321
    %v1689 = vunpack.c.l.b16 %v1322
    %v1690 = vunpack.c.h.b16 %v1322
    %v1691 = vunpack.c.l.b16 %v1323
    %v1692 = vunpack.c.h.b16 %v1323
    %v1693 = vunpack.c.l.b16 %v1324
    %v1694 = vunpack.c.h.b16 %v1324
    %v1695 = vunpack.c.l.b16 %v1325
    %v1696 = vunpack.c.h.b16 %v1325
    %v1697 = vunpack.c.l.b16 %v1326
    %v1698 = vunpack.c.h.b16 %v1326
    %v1699 = vunpack.c.l.b16 %v1327
    %v1700 = vunpack.c.h.b16 %v1327
    %v1701 = vunpack.c.l.b16 %v1328
    %v1702 = vunpack.c.h.b16 %v1328
    %v1703 = vunpack.c.l.b16 %v1329
    %v1704 = vunpack.c.h.b16 %v1329
    %v1705 = vunpack.c.l.b16 %v1330
    %v1706 = vunpack.c.h.b16 %v1330
    %v1707 = vunpack.c.l.b16 %v1331
    %v1708 = vunpack.c.h.b16 %v1331
    %v1709 = vunpack.c.l.b16 %v1332
    %v1710 = vunpack.c.h.b16 %v1332
    %v1711 = vunpack.c.l.b16 %v1333
    %v1712 = vunpack.c.h.b16 %v1333
    %v1713 = vunpack.c.l.b16 %v1334
    %v1714 = vunpack.c.h.b16 %v1334
    %v1715 = vunpack.c.l.b16 %v1335
    %v1716 = vunpack.c.h.b16 %v1335
    %v1717 = vunpack.c.l.b16 %v1336
    %v1718 = vunpack.c.h.b16 %v1336
    %v1719 = vunpack.c.l.b16 %v1337
    %v1720 = vunpack.c.h.b16 %v1337
    %v1721 = vunpack.c.l.b16 %v1338
    %v1722 = vunpack.c.h.b16 %v1338
    %v1723 = vunpack.c.l.b16 %v1339
    %v1724 = vunpack.c.h.b16 %v1339
    %v1725 = vunpack.c.l.b16 %v1340
    %v1726 = vunpack.c.h.b16 %v1340
    %v1727 = vunpack.c.l.b16 %v1341
    %v1728 = vunpack.c.h.b16 %v1341
    %v1729 = vunpack.c.l.b16 %v1342
    %v1730 = vunpack.c.h.b16 %v1342
    %v1731 = vunpack.c.l.b16 %v1343
    %v1732 = vunpack.c.h.b16 %v1343
    %v1733 = vunpack.c.l.b16 %v1344
    %v1734 = vunpack.c.h.b16 %v1344
    %v1735 = vunpack.c.l.b16 %v1345
    %v1736 = vunpack.c.h.b16 %v1345
    %v1737 = vunpack.c.l.b16 %v1346
    %v1738 = vunpack.c.h.b16 %v1346
    %v1739 = vunpack.c.l.b16 %v1347
    %v1740 = vunpack.c.h.b16 %v1347
    %v1741 = vunpack.c.l.b16 %v1348
    %v1742 = vunpack.c.h.b16 %v1348
    %v1743 = vunpack.c.l.b16 %v1349
    %v1744 = vunpack.c.h.b16 %v1349
    %v1745 = vunpack.c.l.b16 %v1350
    %v1746 = vunpack.c.h.b16 %v1350
    %v1747 = vunpack.c.l.b16 %v1351
    %v1748 = vunpack.c.h.b16 %v1351
    %v1749 = vunpack.c.l.b16 %v1352
    %v1750 = vunpack.c.h.b16 %v1352
    %v1751 = vunpack.c.l.b16 %v1353
    %v1752 = vunpack.c.h.b16 %v1353
    %v1753 = vunpack.c.l.b16 %v1354
    %v1754 = vunpack.c.h.b16 %v1354
    %v1755 = vunpack.c.l.b16 %v1355
    %v1756 = vunpack.c.h.b16 %v1355
    %v1757 = vunpack.c.l.b16 %v1356
    %v1758 = vunpack.c.h.b16 %v1356
    %v1759 = vunpack.c.l.b16 %v1357
    %v1760 = vunpack.c.h.b16 %v1357
    %v1761 = vunpack.c.l.b16 %v1358
    %v1762 = vunpack.c.h.b16 %v1358
    %v1763 = vunpack.c.l.b16 %v1359
    %v1764 = vunpack.c.h.b16 %v1359
    %v1765 = vunpack.c.l.b16 %v1360
    %v1766 = vunpack.c.h.b16 %v1360
    %v1767 = vunpack.c.l.b16 %v1361
    %v1768 = vunpack.c.h.b16 %v1361
    %v1769 = vunpack.c.l.b16 %v1362
    %v1770 = vunpack.c.h.b16 %v1362
    %v1771 = vunpack.c.l.b16 %v1363
    %v1772 = vunpack.c.h.b16 %v1363
    %v1773 = vunpack.c.l.b16 %v1364
    %v1774 = vunpack.c.h.b16 %v1364
    %v1775 = vunpack.c.l.b16 %v1365
    %v1776 = vunpack.c.h.b16 %v1365
    %v1777 = vunpack.c.l.b16 %v1366
    %v1778 = vunpack.c.h.b16 %v1366
    %v1779 = vunpack.c.l.b16 %v1367
    %v1780 = vunpack.c.h.b16 %v1367
    %v1781 = vunpack.c.l.b16 %v1368
    %v1782 = vunpack.c.h.b16 %v1368
    %v1783 = vunpack.c.l.b16 %v1369
    %v1784 = vunpack.c.h.b16 %v1369
    %v1785 = vunpack.c.l.b16 %v1370
    %v1786 = vunpack.c.h.b16 %v1370
    %v1787 = vunpack.c.l.b16 %v1371
    %v1788 = vunpack.c.h.b16 %v1371
    %v1789 = vunpack.c.l.b16 %v1372
    %v1790 = vunpack.c.h.b16 %v1372
    %v1791 = vunpack.c.l.b16 %v1373
    %v1792 = vunpack.c.h.b16 %v1373
    %v1793 = vunpack.c.l.b16 %v1374
    %v1794 = vunpack.c.h.b16 %v1374
    %v1795 = vunpack.c.l.b16 %v1375
    %v1796 = vunpack.c.h.b16 %v1375
    %v1797 = vunpack.c.l.b16 %v1376
    %v1798 = vunpack.c.h.b16 %v1376
    %v1799 = vunpack.c.l.b16 %v1377
    %v1800 = vunpack.c.h.b16 %v1377
    %v1801 = vunpack.c.l.b16 %v1378
    %v1802 = vunpack.c.h.b16 %v1378
    %v1803 = vunpack.c.l.b16 %v1379
    %v1804 = vunpack.c.h.b16 %v1379
    %v1805 = vpack.c.b16 %v1557, %v1549
    %v1806 = vpack.c.b16 %v1558, %v1550
    %v1807 = vpack.c.b16 %v1559, %v1551
    %v1808 = vpack.c.b16 %v1560, %v1552
    %v1809 = vpack.c.b16 %v1561, %v1553
    %v1810 = vpack.c.b16 %v1562, %v1554
    %v1811 = vpack.c.b16 %v1563, %v1555
    %v1812 = vpack.c.b16 %v1564, %v1556
    %v1813 = vpack.c.b16 %v1573, %v1565
    %v1814 = vpack.c.b16 %v1574, %v1566
    %v1815 = vpack.c.b16 %v1575, %v1567
    %v1816 = vpack.c.b16 %v1576, %v1568
    %v1817 = vpack.c.b16 %v1577, %v1569
    %v1818 = vpack.c.b16 %v1578, %v1570
    %v1819 = vpack.c.b16 %v1579, %v1571
    %v1820 = vpack.c.b16 %v1580, %v1572
    %v1821 = vpack.c.b16 %v1589, %v1581
    %v1822 = vpack.c.b16 %v1590, %v1582
    %v1823 = vpack.c.b16 %v1591, %v1583
    %v1824 = vpack.c.b16 %v1592, %v1584
    %v1825 = vpack.c.b16 %v1593, %v1585
    %v1826 = vpack.c.b16 %v1594, %v1586
    %v1827 = vpack.c.b16 %v1595, %v1587
    %v1828 = vpack.c.b16 %v1596, %v1588
    %v1829 = vpack.c.b16 %v1605, %v1597
    %v1830 = vpack.c.b16 %v1606, %v1598
    %v1831 = vpack.c.b16 %v1607, %v1599
    %v1832 = vpack.c.b16 %v1608, %v1600
    %v1833 = vpack.c.b16 %v1609, %v1601
    %v1834 = vpack.c.b16 %v1610, %v1602
    %v1835 = vpack.c.b16 %v1611, %v1603
    %v1836 = vpack.c.b16 %v1612, %v1604
    %v1837 = vpack.c.b16 %v1621, %v1613
    %v1838 = vpack.c.b16 %v1622, %v1614
    %v1839 = vpack.c.b16 %v1623, %v1615
    %v1840 = vpack.c.b16 %v1624, %v1616
    %v1841 = vpack.c.b16 %v1625, %v1617
    %v1842 = vpack.c.b16 %v1626, %v1618
    %v1843 = vpack.c.b16 %v1627, %v1619
    %v1844 = vpack.c.b16 %v1628, %v1620
    %v1845 = vpack.c.b16 %v1637, %v1629
    %v1846 = vpack.c.b16 %v1638, %v1630
    %v1847 = vpack.c.b16 %v1639, %v1631
    %v1848 = vpack.c.b16 %v1640, %v1632
    %v1849 = vpack.c.b16 %v1641, %v1633
    %v1850 = vpack.c.b16 %v1642, %v1634
    %v1851 = vpack.c.b16 %v1643, %v1635
    %v1852 = vpack.c.b16 %v1644, %v1636
    %v1853 = vpack.c.b16 %v1653, %v1645
    %v1854 = vpack.c.b16 %v1654, %v1646
    %v1855 = vpack.c.b16 %v1655, %v1647
    %v1856 = vpack.c.b16 %v1656, %v1648
    %v1857 = vpack.c.b16 %v1657, %v1649
    %v1858 = vpack.c.b16 %v1658, %v1650
    %v1859 = vpack.c.b16 %v1659, %v1651
    %v1860 = vpack.c.b16 %v1660, %v1652
    %v1861 = vpack.c.b16 %v1669, %v1661
    %v1862 = vpack.c.b16 %v1670, %v1662
    %v1863 = vpack.c.b16 %v1671, %v1663
    %v1864 = vpack.c.b16 %v1672, %v1664
    %v1865 = vpack.c.b16 %v1673, %v1665
    %v1866 = vpack.c.b16 %v1674, %v1666
    %v1867 = vpack.c.b16 %v1675, %v1667
    %v1868 = vpack.c.b16 %v1676, %v1668
    %v1869 = vpack.c.b16 %v1685, %v1677
    %v1870 = vpack.c.b16 %v1686, %v1678
    %v1871 = vpack.c.b16 %v1687, %v1679
    %v1872 = vpack.c.b16 %v1688, %v1680
    %v1873 = vpack.c.b16 %v1689, %v1681
    %v1874 = vpack.c.b16 %v1690, %v1682
    %v1875 = vpack.c.b16 %v1691, %v1683
    %v1876 = vpack.c.b16 %v1692, %v1684
    %v1877 = vpack.c.b16 %v1701, %v1693
    %v1878 = vpack.c.b16 %v1702, %v1694
    %v1879 = vpack.c.b16 %v1703, %v1695
    %v1880 = vpack.c.b16 %v1704, %v1696
    %v1881 = vpack.c.b16 %v1705, %v1697
    %v1882 = vpack.c.b16 %v1706, %v1698
    %v1883 = vpack.c.b16 %v1707, %v1699
    %v1884 = vpack.c.b16 %v1708, %v1700
    %v1885 = vpack.c.b16 %v1717, %v1709
    %v1886 = vpack.c.b16 %v1718, %v1710
    %v1887 = vpack.c.b16 %v1719, %v1711
    %v1888 = vpack.c.b16 %v1720, %v1712
    %v1889 = vpack.c.b16 %v1721, %v1713
    %v1890 = vpack.c.b16 %v1722, %v1714
    %v1891 = vpack.c.b16 %v1723, %v1715
    %v1892 = vpack.c.b16 %v1724, %v1716
    %v1893 = vpack.c.b16 %v1733, %v1725
    %v1894 = vpack.c.b16 %v1734, %v1726
    %v1895 = vpack.c.b16 %v1735, %v1727
    %v1896 = vpack.c.b16 %v1736, %v1728
    %v1897 = vpack.c.b16 %v1737, %v1729
    %v1898 = vpack.c.b16 %v1738, %v1730
    %v1899 = vpack.c.b16 %v1739, %v1731
    %v1900 = vpack.c.b16 %v1740, %v1732
    %v1901 = vpack.c.b16 %v1749, %v1741
    %v1902 = vpack.c.b16 %v1750, %v1742
    %v1903 = vpack.c.b16 %v1751, %v1743
    %v1904 = vpack.c.b16 %v1752, %v1744
    %v1905 = vpack.c.b16 %v1753, %v1745
    %v1906 = vpack.c.b16 %v1754, %v1746
    %v1907 = vpack.c.b16 %v1755, %v1747
    %v1908 = vpack.c.b16 %v1756, %v1748
    %v1909 = vpack.c.b16 %v1765, %v1757
    %v1910 = vpack.c.b16 %v1766, %v1758
    %v1911 = vpack.c.b16 %v1767, %v1759
    %v1912 = vpack.c.b16 %v1768, %v1760
    %v1913 = vpack.c.b16 %v1769, %v1761
    %v1914 = vpack.c.b16 %v1770, %v1762
    %v1915 = vpack.c.b16 %v1771, %v1763
    %v1916 = vpack.c.b16 %v1772, %v1764
    %v1917 = vpack.c.b16 %v1781, %v1773
    %v1918 = vpack.c.b16 %v1782, %v1774
    %v1919 = vpack.c.b16 %v1783, %v1775
    %v1920 = vpack.c.b16 %v1784, %v1776
    %v1921 = vpack.c.b16 %v1785, %v1777
    %v1922 = vpack.c.b16 %v1786, %v1778
    %v1923 = vpack.c.b16 %v1787, %v1779
    %v1924 = vpack.c.b16 %v1788, %v1780
    %v1925 = vpack.c.b16 %v1797, %v1789
    %v1926 = vpack.c.b16 %v1798, %v1790
    %v1927 = vpack.c.b16 %v1799, %v1791
    %v1928 = vpack.c.b16 %v1800, %v1792
    %v1929 = vpack.c.b16 %v1801, %v1793
    %v1930 = vpack.c.b16 %v1802, %v1794
    %v1931 = vpack.c.b16 %v1803, %v1795
    %v1932 = vpack.c.b16 %v1804, %v1796
    %2061 = vmatprep.subr.bf16.mxu0 %v1862
    %2062 = vmatpush1.bf16.msra.mxu0 %v1861
    %2063 = vmatprep.subr.bf16.mxu0 %v1854
    %2064 = vmatpush1.bf16.msra.mxu0 %v1853
    %2065 = vmatprep.subr.bf16.mxu0 %v1846
    %2066 = vmatpush1.bf16.msra.mxu0 %v1845
    %2067 = vmatprep.subr.bf16.mxu0 %v1838
    %2068 = vmatpush1.bf16.msra.mxu0 %v1837
    %2069 = vmatprep.subr.bf16.mxu0 %v1830
    %2070 = vmatpush1.bf16.msra.mxu0 %v1829
    %2071 = vmatprep.subr.bf16.mxu0 %v1822
    %2072 = vmatpush1.bf16.msra.mxu0 %v1821
    %2073 = vmatprep.subr.bf16.mxu0 %v1814
    %2074 = vmatpush1.bf16.msra.mxu0 %v1813
    %2075 = vmatprep.subr.bf16.mxu0 %v1806
    %2076 = vmatpush1.bf16.msra.mxu0 %v1805
    %2077 = vmatprep.subr.bf16.mxu0 %v1926
    %2078 = vmatpush2.bf16.msra.mxu0 %v1925
    %2079 = vmatprep.subr.bf16.mxu0 %v1918
    %2080 = vmatpush2.bf16.msra.mxu0 %v1917
    %2081 = vmatprep.subr.bf16.mxu0 %v1910
    %2082 = vmatpush2.bf16.msra.mxu0 %v1909
    %2083 = vmatprep.subr.bf16.mxu0 %v1902
    %2084 = vmatpush2.bf16.msra.mxu0 %v1901
    %2085 = vmatprep.subr.bf16.mxu0 %v1894
    %2086 = vmatpush2.bf16.msra.mxu0 %v1893
    %2087 = vmatprep.subr.bf16.mxu0 %v1886
    %2088 = vmatpush2.bf16.msra.mxu0 %v1885
    %2089 = vmatprep.subr.bf16.mxu0 %v1878
    %2090 = vmatpush2.bf16.msra.mxu0 %v1877
    %2091 = vmatprep.subr.bf16.mxu0 %v1870
    %2092 = vmatpush2.bf16.msra.mxu0 %v1869
    %2093 = vmatprep.mubr.bf16.mxu0 %v1251
    %2094 = vmatmul.mubr.bf16.gmra.mxu0 %v1250
    %v2095 = vpop.f32.mrf.mxu0
    %v2096 = vadd.f32 %v1384, %v2095
    %v2097 = vpop.f32.mrf.mxu0
    %v2098 = vadd.f32 %v1388, %v2097
    %v2099 = vpop.f32.mrf.mxu0
    %v2100 = vpop.f32.mrf.mxu0
    %2101 = vdwg.mxu0
    %2102 = vmatprep.subr.bf16.mxu0 %v1864
    %2103 = vmatpush1.bf16.msra.mxu0 %v1863
    %2104 = vmatprep.subr.bf16.mxu0 %v1856
    %2105 = vmatpush1.bf16.msra.mxu0 %v1855
    %2106 = vmatprep.subr.bf16.mxu0 %v1848
    %2107 = vmatpush1.bf16.msra.mxu0 %v1847
    %2108 = vmatprep.subr.bf16.mxu0 %v1840
    %2109 = vmatpush1.bf16.msra.mxu0 %v1839
    %2110 = vmatprep.subr.bf16.mxu0 %v1832
    %2111 = vmatpush1.bf16.msra.mxu0 %v1831
    %2112 = vmatprep.subr.bf16.mxu0 %v1824
    %2113 = vmatpush1.bf16.msra.mxu0 %v1823
    %2114 = vmatprep.subr.bf16.mxu0 %v1816
    %2115 = vmatpush1.bf16.msra.mxu0 %v1815
    %2116 = vmatprep.subr.bf16.mxu0 %v1808
    %2117 = vmatpush1.bf16.msra.mxu0 %v1807
    %2118 = vmatprep.subr.bf16.mxu0 %v1928
    %2119 = vmatpush2.bf16.msra.mxu0 %v1927
    %2120 = vmatprep.subr.bf16.mxu0 %v1920
    %2121 = vmatpush2.bf16.msra.mxu0 %v1919
    %2122 = vmatprep.subr.bf16.mxu0 %v1912
    %2123 = vmatpush2.bf16.msra.mxu0 %v1911
    %2124 = vmatprep.subr.bf16.mxu0 %v1904
    %2125 = vmatpush2.bf16.msra.mxu0 %v1903
    %2126 = vmatprep.subr.bf16.mxu0 %v1896
    %2127 = vmatpush2.bf16.msra.mxu0 %v1895
    %2128 = vmatprep.subr.bf16.mxu0 %v1888
    %2129 = vmatpush2.bf16.msra.mxu0 %v1887
    %2130 = vmatprep.subr.bf16.mxu0 %v1880
    %2131 = vmatpush2.bf16.msra.mxu0 %v1879
    %2132 = vmatprep.subr.bf16.mxu0 %v1872
    %2133 = vmatpush2.bf16.msra.mxu0 %v1871
    %2134 = vmatprep.mubr.bf16.mxu0 %v1251
    %2135 = vmatmul.mubr.bf16.gmra.mxu0 %v1250
    %v2136 = vpop.f32.mrf.mxu0
    %v2137 = vadd.f32 %v1392, %v2136
    %v2138 = vpop.f32.mrf.mxu0
    %v2139 = vadd.f32 %v1396, %v2138
    %v2140 = vpop.f32.mrf.mxu0
    %v2141 = vpop.f32.mrf.mxu0
    %2142 = vdwg.mxu0
    %2143 = vmatprep.subr.bf16.mxu0 %v1866
    %2144 = vmatpush1.bf16.msra.mxu0 %v1865
    %2145 = vmatprep.subr.bf16.mxu0 %v1858
    %2146 = vmatpush1.bf16.msra.mxu0 %v1857
    %2147 = vmatprep.subr.bf16.mxu0 %v1850
    %2148 = vmatpush1.bf16.msra.mxu0 %v1849
    %2149 = vmatprep.subr.bf16.mxu0 %v1842
    %2150 = vmatpush1.bf16.msra.mxu0 %v1841
    %2151 = vmatprep.subr.bf16.mxu0 %v1834
    %2152 = vmatpush1.bf16.msra.mxu0 %v1833
    %2153 = vmatprep.subr.bf16.mxu0 %v1826
    %2154 = vmatpush1.bf16.msra.mxu0 %v1825
    %2155 = vmatprep.subr.bf16.mxu0 %v1818
    %2156 = vmatpush1.bf16.msra.mxu0 %v1817
    %2157 = vmatprep.subr.bf16.mxu0 %v1810
    %2158 = vmatpush1.bf16.msra.mxu0 %v1809
    %2159 = vmatprep.subr.bf16.mxu0 %v1930
    %2160 = vmatpush2.bf16.msra.mxu0 %v1929
    %2161 = vmatprep.subr.bf16.mxu0 %v1922
    %2162 = vmatpush2.bf16.msra.mxu0 %v1921
    %2163 = vmatprep.subr.bf16.mxu0 %v1914
    %2164 = vmatpush2.bf16.msra.mxu0 %v1913
    %2165 = vmatprep.subr.bf16.mxu0 %v1906
    %2166 = vmatpush2.bf16.msra.mxu0 %v1905
    %2167 = vmatprep.subr.bf16.mxu0 %v1898
    %2168 = vmatpush2.bf16.msra.mxu0 %v1897
    %2169 = vmatprep.subr.bf16.mxu0 %v1890
    %2170 = vmatpush2.bf16.msra.mxu0 %v1889
    %2171 = vmatprep.subr.bf16.mxu0 %v1882
    %2172 = vmatpush2.bf16.msra.mxu0 %v1881
    %2173 = vmatprep.subr.bf16.mxu0 %v1874
    %2174 = vmatpush2.bf16.msra.mxu0 %v1873
    %2175 = vmatprep.mubr.bf16.mxu0 %v1251
    %2176 = vmatmul.mubr.bf16.gmra.mxu0 %v1250
    %v2177 = vpop.f32.mrf.mxu0
    %v2178 = vadd.f32 %v1400, %v2177
    %v2179 = vpop.f32.mrf.mxu0
    %v2180 = vadd.f32 %v1404, %v2179
    %v2181 = vpop.f32.mrf.mxu0
    %v2182 = vpop.f32.mrf.mxu0
    %2183 = vdwg.mxu0
    %2184 = vmatprep.subr.bf16.mxu0 %v1868
    %2185 = vmatpush1.bf16.msra.mxu0 %v1867
    %2186 = vmatprep.subr.bf16.mxu0 %v1860
    %2187 = vmatpush1.bf16.msra.mxu0 %v1859
    %2188 = vmatprep.subr.bf16.mxu0 %v1852
    %2189 = vmatpush1.bf16.msra.mxu0 %v1851
    %2190 = vmatprep.subr.bf16.mxu0 %v1844
    %2191 = vmatpush1.bf16.msra.mxu0 %v1843
    %2192 = vmatprep.subr.bf16.mxu0 %v1836
    %2193 = vmatpush1.bf16.msra.mxu0 %v1835
    %2194 = vmatprep.subr.bf16.mxu0 %v1828
    %2195 = vmatpush1.bf16.msra.mxu0 %v1827
    %2196 = vmatprep.subr.bf16.mxu0 %v1820
    %2197 = vmatpush1.bf16.msra.mxu0 %v1819
    %2198 = vmatprep.subr.bf16.mxu0 %v1812
    %2199 = vmatpush1.bf16.msra.mxu0 %v1811
    %2200 = vmatprep.subr.bf16.mxu0 %v1932
    %2201 = vmatpush2.bf16.msra.mxu0 %v1931
    %2202 = vmatprep.subr.bf16.mxu0 %v1924
    %2203 = vmatpush2.bf16.msra.mxu0 %v1923
    %2204 = vmatprep.subr.bf16.mxu0 %v1916
    %2205 = vmatpush2.bf16.msra.mxu0 %v1915
    %2206 = vmatprep.subr.bf16.mxu0 %v1908
    %2207 = vmatpush2.bf16.msra.mxu0 %v1907
    %2208 = vmatprep.subr.bf16.mxu0 %v1900
    %2209 = vmatpush2.bf16.msra.mxu0 %v1899
    %2210 = vmatprep.subr.bf16.mxu0 %v1892
    %2211 = vmatpush2.bf16.msra.mxu0 %v1891
    %2212 = vmatprep.subr.bf16.mxu0 %v1884
    %2213 = vmatpush2.bf16.msra.mxu0 %v1883
    %2214 = vmatprep.subr.bf16.mxu0 %v1876
    %2215 = vmatpush2.bf16.msra.mxu0 %v1875
    %2216 = vmatprep.mubr.bf16.mxu0 %v1251
    %2217 = vmatmul.mubr.bf16.gmra.mxu0 %v1250
    %v2218 = vpop.f32.mrf.mxu0
    %v2219 = vadd.f32 %v1408, %v2218
    %v2220 = vpop.f32.mrf.mxu0
    %v2221 = vadd.f32 %v1412, %v2220
    %v2222 = vpop.f32.mrf.mxu0
    %v2223 = vpop.f32.mrf.mxu0
    %2224 = vdwg.mxu0
    %v2225 = vpack.c.bf16 %v2096, %v2096
    %v2226 = vpack.c.bf16 %v2098, %v2098
    %v2227 = vpack.c.bf16 %v2137, %v2137
    %v2228 = vpack.c.bf16 %v2139, %v2139
    %v2229 = vpack.c.bf16 %v2178, %v2178
    %v2230 = vpack.c.bf16 %v2180, %v2180
    %v2231 = vpack.c.bf16 %v2219, %v2219
    %v2232 = vpack.c.bf16 %v2221, %v2221
    %v2241 = vunpack.c.l.b16 %v2225
    %v2242 = vunpack.c.l.b16 %v2226
    %v2243 = vunpack.c.l.b16 %v2227
    %v2244 = vunpack.c.l.b16 %v2228
    %v2245 = vunpack.c.l.b16 %v2229
    %v2246 = vunpack.c.l.b16 %v2230
    %v2247 = vunpack.c.l.b16 %v2231
    %v2248 = vunpack.c.l.b16 %v2232
    %v2249 = vpack.c.b16 %v2242, %v2241
    %v2250 = vpack.c.b16 %v2244, %v2243
    %v2251 = vpack.c.b16 %v2246, %v2245
    %v2252 = vpack.c.b16 %v2248, %v2247
    %2257 = vst [vmem:[%s9] sm:$0xff] %v2249
    %2258 = vst [vmem:[%s9 + $0x8] sm:$0xff] %v2250
    %2259 = vst [vmem:[%s9 + $0x10] sm:$0xff] %v2251
    %2260 = vst [vmem:[%s9 + $0x18] sm:$0xff] %v2252
    // Predicated region
    $region62: #{linear_model_cvae_forward.1} parent=1 // pred_check
      _
    $region63: #{linear_model_cvae_forward.1} parent=1 // pred_check_branch
      %2262 = sbr.rel (0) target = $region65
    $region64: #{linear_model_cvae_forward.1} parent=1 // pred_region
      _
    $region65: #{linear_model_cvae_forward.1} parent=1 // pred_fallthru
      _
    // Predicated region
    $region66: #{linear_model_cvae_forward.1} parent=1 // pred_check
      _
    $region67: #{linear_model_cvae_forward.1} parent=1 // pred_check_branch
      %2264 = sbr.rel (0) target = $region69
    $region68: #{linear_model_cvae_forward.1} parent=1 // pred_region
      _
    $region69: #{linear_model_cvae_forward.1} parent=1 // pred_fallthru
      _
    %2265 = vsyncpa [#allocation3], 1
    %2266 = vsyncpa [#allocation5], 1
    %2267 = vsyncpa [#allocation8], 1
    %2268 = vsyncpa [#allocation11], 1

</llo_original>
